<compile_context>
chip_gen: v5e
topology: v5e:2x2
jax: 0.10.0
libtpu: 0.0.40
codegen_flags: <defaults>
</compile_context>

<pallas_src>
from functools import partial

import jax
import jax.numpy as jnp
from jax.experimental import pallas as pl
from jax.experimental.pallas import tpu as pltpu


def attention_kernel(x_ref, w_qkv_ref, b_qkv_ref, w_out_ref, b_out_ref, o_ref,
                     *, heads, dim_head, eps, mxu_dtype):
    bt, n, d = x_ref.shape
    inner = heads * dim_head

    # ---- LayerNorm statistics in f32 over the feature dim.  gamma / beta /
    #      softmax-scale are pre-folded into the fused qkv weight & bias on
    #      the host, so only the normalization happens here.
    x = x_ref[...].reshape(bt * n, d).astype(jnp.float32)
    mean = jnp.mean(x, axis=-1, keepdims=True)
    var = jnp.mean(jnp.square(x - mean), axis=-1, keepdims=True)
    xn = ((x - mean) * jax.lax.rsqrt(var + eps)).astype(mxu_dtype)

    # ---- ONE fused, lane-dense qkv projection: (Bt*N, D) @ (D, 3*inner).
    qkv = jnp.dot(xn, w_qkv_ref[...], preferred_element_type=jnp.float32)
    qkv = (qkv + b_qkv_ref[...]).astype(mxu_dtype)            # (Bt*N, 3*inner)

    # ---- split q/k/v and heads: '(b n) (h e)' -> '(b h) n e'
    def to_heads(t):
        t = t.reshape(bt, n, heads, dim_head)
        return t.transpose(0, 2, 1, 3).reshape(bt * heads, n, dim_head)

    q = to_heads(qkv[:, 0 * inner:1 * inner])
    k = to_heads(qkv[:, 1 * inner:2 * inner])
    v = to_heads(qkv[:, 2 * inner:3 * inner])

    # ---- scaled dot-product attention, heads batched in one dot_general
    #      (the softmax scale is already folded into q).
    s = jnp.einsum('gqe,gke->gqk', q, k,
                   preferred_element_type=jnp.float32)        # (Bt*H, N, N)
    s = s - jnp.max(s, axis=-1, keepdims=True)
    p = jnp.exp(s)
    denom = jnp.sum(p, axis=-1, keepdims=True)                # (Bt*H, N, 1)

    # Un-normalized P @ V; the 1/denom is deferred to the (Bt*H, N, dh)
    # context.  Exact divide (pl.reciprocal(denom, approx=True) is the EUP
    # fast path if the accuracy budget allows).
    ctx = jnp.einsum('gqk,gke->gqe', p.astype(mxu_dtype), v,
                     preferred_element_type=jnp.float32)      # (Bt*H, N, dh)
    ctx = ctx / denom

    # ---- merge heads '(b h) n e -> (b n) (h e)' and ONE lane-dense output
    #      projection with contraction = inner = heads*dim_head.
    ctx = ctx.reshape(bt, heads, n, dim_head).transpose(0, 2, 1, 3)
    ctx = ctx.reshape(bt * n, inner).astype(mxu_dtype)
    out = jnp.dot(ctx, w_out_ref[...], preferred_element_type=jnp.float32)
    out = out + b_out_ref[...]                                # (Bt*N, D) f32

    # Dropout p = 0.0 -> identity.
    o_ref[...] = out.reshape(bt, n, d).astype(o_ref.dtype)


def _weight_spec(block_shape):
    """Constant (grid-invariant) operand: single-buffer it when supported."""
    index_map = lambda b, _nd=len(block_shape): (0,) * _nd
    if hasattr(pl, "Buffered"):
        try:
            return pl.BlockSpec(block_shape, index_map,
                                pipeline_mode=pl.Buffered(1))
        except TypeError:   # older JAX without per-BlockSpec pipeline_mode
            pass
    return pl.BlockSpec(block_shape, index_map)


def attention_pallas(x, gamma, beta, w_qkv, w_out, b_out, *, heads, dim_head,
                     block_b=None, mxu_dtype=None):
    B, N, D = x.shape
    inner = heads * dim_head
    assert w_qkv.shape == (D, 3 * inner) and w_out.shape == (inner, D)
    scale = float(dim_head) ** -0.5
    eps = 1e-5

    if mxu_dtype is None:
        mxu_dtype = x.dtype            # pass jnp.bfloat16 for v6e/v7x MXU rate
    if block_b is None:
        block_b = max(1, B // 2)       # two fat grid steps (one per TC half)
        while B % block_b:
            block_b -= 1
    assert B % block_b == 0

    # ---- Host-side folding (done once): LayerNorm gamma scales the rows of
    #      the fused qkv weight, beta becomes a fused qkv bias, and the
    #      softmax scale multiplies the q third of both.
    g = gamma.reshape(D).astype(jnp.float32)
    bt_ = beta.reshape(D).astype(jnp.float32)
    w32 = w_qkv.astype(jnp.float32)
    col_scale = jnp.concatenate([jnp.full((inner,), scale, jnp.float32),
                                 jnp.ones((2 * inner,), jnp.float32)])
    w_qkv_f = ((g[:, None] * w32) * col_scale[None, :]).astype(mxu_dtype)
    b_qkv_f = ((bt_ @ w32) * col_scale).reshape(1, 3 * inner).astype(jnp.float32)
    w_out_f = w_out.astype(mxu_dtype)                          # (inner, D)
    b_out_f = b_out.reshape(1, D).astype(jnp.float32)

    kernel = partial(attention_kernel, heads=heads, dim_head=dim_head,
                     eps=eps, mxu_dtype=mxu_dtype)

    return pl.pallas_call(
        kernel,
        out_shape=jax.ShapeDtypeStruct((B, N, D), x.dtype),
        grid_spec=pltpu.PrefetchScalarGridSpec(
            num_scalar_prefetch=0,
            grid=(B // block_b,),
            in_specs=[
                pl.BlockSpec((block_b, N, D), lambda b: (b, 0, 0)),   # x
                _weight_spec((D, 3 * inner)),                         # W_qkv
                _weight_spec((1, 3 * inner)),                         # b_qkv
                _weight_spec((inner, D)),                             # W_out
                _weight_spec((1, D)),                                 # b_out
            ],
            out_specs=pl.BlockSpec((block_b, N, D), lambda b: (b, 0, 0)),
        ),
        compiler_params=pltpu.CompilerParams(
            dimension_semantics=("parallel",),
            vmem_limit_bytes=32 * 1024 * 1024,
        ),
    )(x, w_qkv_f, b_qkv_f, w_out_f, b_out_f)


def attention_ref(x, gamma, beta, w_qkv, w_out, b_out, *, heads, dim_head):
    """Pure-JAX oracle mirroring the PyTorch forward (full-precision matmuls)."""
    B, N, D = x.shape
    inner = heads * dim_head
    scale = float(dim_head) ** -0.5
    hp = jax.lax.Precision.HIGHEST
    mean = jnp.mean(x, axis=-1, keepdims=True)
    var = jnp.mean((x - mean) ** 2, axis=-1, keepdims=True)
    xn = (x - mean) / jnp.sqrt(var + 1e-5) * gamma[0] + beta[0]
    qkv = jnp.dot(xn, w_qkv, precision=hp)
    q, k, v = jnp.split(qkv, 3, axis=-1)
    def to_heads(t):
        return t.reshape(B, N, heads, dim_head).transpose(0, 2, 1, 3)
    q, k, v = map(to_heads, (q, k, v))
    dots = jnp.einsum('bhnd,bhmd->bhnm', q, k, precision=hp) * scale
    attn = jax.nn.softmax(dots, axis=-1)
    out = jnp.einsum('bhnm,bhmd->bhnd', attn, v, precision=hp)
    out = out.transpose(0, 2, 1, 3).reshape(B, N, inner)
    return jnp.dot(out, w_out, precision=hp) + b_out[0]


if __name__ == "__main__":
    # Both the kernel trace and the oracle use true-f32 matmuls so the f32
    # comparison is meaningful (the TPU default matmul precision truncates
    # operands to bf16, which is what broke the previous comparison).
    jax.config.update("jax_default_matmul_precision", "highest")

    # Small shapes consistent with the module: dim=32, heads=4, dim_head=8.
    B, N, D = 2, 8, 32
    heads, dim_head = 4, 8
    inner = heads * dim_head

    key = jax.random.PRNGKey(0)
    kx, kg, kb, kqkv, kw, kbo = jax.random.split(key, 6)

    x = jax.random.normal(kx, (B, N, D), dtype=jnp.float32)
    gamma = (1.0 + 0.1 * jax.random.normal(kg, (1, D))).astype(jnp.float32)
    beta = (0.1 * jax.random.normal(kb, (1, D))).astype(jnp.float32)
    w_qkv = (jax.random.normal(kqkv, (D, 3 * inner)) * (D ** -0.5)).astype(jnp.float32)
    w_out = (jax.random.normal(kw, (inner, D)) * (inner ** -0.5)).astype(jnp.float32)
    b_out = (0.05 * jax.random.normal(kbo, (1, D))).astype(jnp.float32)

    out = attention_pallas(x, gamma, beta, w_qkv, w_out, b_out,
                           heads=heads, dim_head=dim_head)
    out = jax.block_until_ready(out)

    ref = attention_ref(x, gamma, beta, w_qkv, w_out, b_out,
                        heads=heads, dim_head=dim_head)
    assert out.shape == (B, N, D)
    max_err = float(jnp.max(jnp.abs(out - ref)))
    assert jnp.allclose(out, ref, atol=2e-3, rtol=2e-3), (
        f"mismatch vs reference (max abs err {max_err:.3e})")

    print("KERNEL_OK")
</pallas_src>

<mosaic_0001>
module attributes {stable_mosaic.version = 11 : i64} {
  func.func @attention_kernel(%arg0: i32, %arg1: memref<1x8x32xf32, #tpu.memory_space<vmem>>, %arg2: memref<32x96xf32, #tpu.memory_space<vmem>>, %arg3: memref<1x96xf32, #tpu.memory_space<vmem>>, %arg4: memref<32x32xf32, #tpu.memory_space<vmem>>, %arg5: memref<1x32xf32, #tpu.memory_space<vmem>>, %arg6: memref<1x8x32xf32, #tpu.memory_space<vmem>>) attributes {dimension_semantics = [#tpu.dimension_semantics<parallel>], iteration_bounds = array<i64: 2>, scalar_prefetch = 0 : i64, scratch_operands = 0 : i64, tpu.core_type = #tpu.core_type<tc>, window_params = [{transform_indices = @transform_0, window_bounds = array<i64: 1, 8, 32>}, {pipeline_mode = #tpu.pipeline_mode<synchronous>, transform_indices = @transform_1, window_bounds = array<i64: 32, 96>}, {pipeline_mode = #tpu.pipeline_mode<synchronous>, transform_indices = @transform_2, window_bounds = array<i64: 1, 96>}, {pipeline_mode = #tpu.pipeline_mode<synchronous>, transform_indices = @transform_3, window_bounds = array<i64: 32, 32>}, {pipeline_mode = #tpu.pipeline_mode<synchronous>, transform_indices = @transform_4, window_bounds = array<i64: 1, 32>}, {transform_indices = @transform_5, window_bounds = array<i64: 1, 8, 32>}]} {
    %c0 = arith.constant 0 : index
    %c0_0 = arith.constant 0 : index
    %c0_1 = arith.constant 0 : index
    %0 = vector.load %arg1[%c0, %c0_0, %c0_1] : memref<1x8x32xf32, #tpu.memory_space<vmem>>, vector<1x8x32xf32>
    %1 = vector.shape_cast %0 : vector<1x8x32xf32> to vector<8x32xf32>
    %cst = arith.constant dense<0.000000e+00> : vector<8xf32>
    %2 = vector.multi_reduction <add>, %1, %cst [1] : vector<8x32xf32> to vector<8xf32>
    %3 = vector.shape_cast %2 : vector<8xf32> to vector<8x1xf32>
    %cst_2 = arith.constant 3.200000e+01 : f32
    %4 = vector.broadcast %cst_2 : f32 to vector<8x1xf32>
    %5 = arith.divf %3, %4 : vector<8x1xf32>
    %6 = vector.broadcast %5 : vector<8x1xf32> to vector<8x32xf32>
    %7 = arith.subf %1, %6 : vector<8x32xf32>
    %8 = arith.mulf %7, %7 : vector<8x32xf32>
    %cst_3 = arith.constant dense<0.000000e+00> : vector<8xf32>
    %9 = vector.multi_reduction <add>, %8, %cst_3 [1] : vector<8x32xf32> to vector<8xf32>
    %10 = vector.shape_cast %9 : vector<8xf32> to vector<8x1xf32>
    %cst_4 = arith.constant 3.200000e+01 : f32
    %11 = vector.broadcast %cst_4 : f32 to vector<8x1xf32>
    %12 = arith.divf %10, %11 : vector<8x1xf32>
    %13 = vector.broadcast %5 : vector<8x1xf32> to vector<8x32xf32>
    %14 = arith.subf %1, %13 : vector<8x32xf32>
    %cst_5 = arith.constant 9.99999974E-6 : f32
    %15 = vector.broadcast %cst_5 : f32 to vector<8x1xf32>
    %16 = arith.addf %12, %15 : vector<8x1xf32>
    %17 = math.rsqrt %16 : vector<8x1xf32>
    %18 = vector.broadcast %17 : vector<8x1xf32> to vector<8x32xf32>
    %19 = arith.mulf %14, %18 : vector<8x32xf32>
    %c0_6 = arith.constant 0 : index
    %c0_7 = arith.constant 0 : index
    %20 = vector.load %arg2[%c0_6, %c0_7] : memref<32x96xf32, #tpu.memory_space<vmem>>, vector<32x96xf32>
    %cst_8 = arith.constant dense<0.000000e+00> : vector<8x96xf32>
    %21 = tpu.matmul %19, %20, %cst_8 {dimension_numbers = #tpu.dot_dimension_numbers<[1], [0], [0], [1], [0, 0, 1, 1], [], []>, precision = #tpu.contract_precision<fp32>} : vector<8x32xf32>, vector<32x96xf32>, vector<8x96xf32> -> vector<8x96xf32>
    %c0_9 = arith.constant 0 : index
    %c0_10 = arith.constant 0 : index
    %22 = vector.load %arg3[%c0_9, %c0_10] : memref<1x96xf32, #tpu.memory_space<vmem>>, vector<1x96xf32>
    %23 = vector.broadcast %22 : vector<1x96xf32> to vector<8x96xf32>
    %24 = arith.addf %21, %23 : vector<8x96xf32>
    %25 = vector.extract_strided_slice %24 {offsets = [0, 0], sizes = [8, 32], strides = [1, 1]} : vector<8x96xf32> to vector<8x32xf32>
    %26 = vector.shape_cast %25 : vector<8x32xf32> to vector<1x8x4x8xf32>
    %27 = tpu.transpose %26, [0, 2, 1, 3] : vector<1x8x4x8xf32> -> vector<1x4x8x8xf32>
    %28 = vector.shape_cast %27 : vector<1x4x8x8xf32> to vector<4x8x8xf32>
    %29 = vector.extract_strided_slice %24 {offsets = [0, 32], sizes = [8, 32], strides = [1, 1]} : vector<8x96xf32> to vector<8x32xf32>
    %30 = vector.shape_cast %29 : vector<8x32xf32> to vector<1x8x4x8xf32>
    %31 = tpu.transpose %30, [0, 2, 1, 3] : vector<1x8x4x8xf32> -> vector<1x4x8x8xf32>
    %32 = vector.shape_cast %31 : vector<1x4x8x8xf32> to vector<4x8x8xf32>
    %33 = vector.extract_strided_slice %24 {offsets = [0, 64], sizes = [8, 32], strides = [1, 1]} : vector<8x96xf32> to vector<8x32xf32>
    %34 = vector.shape_cast %33 : vector<8x32xf32> to vector<1x8x4x8xf32>
    %35 = tpu.transpose %34, [0, 2, 1, 3] : vector<1x8x4x8xf32> -> vector<1x4x8x8xf32>
    %36 = vector.shape_cast %35 : vector<1x4x8x8xf32> to vector<4x8x8xf32>
    "tpu.trace_start"() <{level = 10 : i32, message = "gqe,gke->gqk"}> : () -> ()
    %cst_11 = arith.constant dense<0.000000e+00> : vector<4x8x8xf32>
    %37 = tpu.matmul %28, %32, %cst_11 {dimension_numbers = #tpu.dot_dimension_numbers<[2], [2], [1], [1], [0, 0, 0, 1, 1, 1], [0], [0]>, precision = #tpu.contract_precision<fp32>} : vector<4x8x8xf32>, vector<4x8x8xf32>, vector<4x8x8xf32> -> vector<4x8x8xf32>
    "tpu.trace_stop"() : () -> ()
    %cst_12 = arith.constant dense<0xFF800000> : vector<4x8xf32>
    %38 = vector.multi_reduction <maximumf>, %37, %cst_12 [2] : vector<4x8x8xf32> to vector<4x8xf32>
    %39 = vector.shape_cast %38 : vector<4x8xf32> to vector<4x8x1xf32>
    %40 = vector.broadcast %39 : vector<4x8x1xf32> to vector<4x8x8xf32>
    %41 = arith.subf %37, %40 : vector<4x8x8xf32>
    %42 = math.exp %41 : vector<4x8x8xf32>
    %cst_13 = arith.constant dense<0.000000e+00> : vector<4x8xf32>
    %43 = vector.multi_reduction <add>, %42, %cst_13 [2] : vector<4x8x8xf32> to vector<4x8xf32>
    %44 = vector.shape_cast %43 : vector<4x8xf32> to vector<4x8x1xf32>
    "tpu.trace_start"() <{level = 10 : i32, message = "gqk,gke->gqe"}> : () -> ()
    %cst_14 = arith.constant dense<0.000000e+00> : vector<4x8x8xf32>
    %45 = tpu.matmul %42, %36, %cst_14 {dimension_numbers = #tpu.dot_dimension_numbers<[2], [1], [1], [2], [0, 0, 0, 1, 1, 2], [0], [0]>, precision = #tpu.contract_precision<fp32>} : vector<4x8x8xf32>, vector<4x8x8xf32>, vector<4x8x8xf32> -> vector<4x8x8xf32>
    "tpu.trace_stop"() : () -> ()
    %46 = vector.broadcast %44 : vector<4x8x1xf32> to vector<4x8x8xf32>
    %47 = arith.divf %45, %46 : vector<4x8x8xf32>
    %48 = vector.shape_cast %47 : vector<4x8x8xf32> to vector<1x4x8x8xf32>
    %49 = tpu.transpose %48, [0, 2, 1, 3] : vector<1x4x8x8xf32> -> vector<1x8x4x8xf32>
    %50 = vector.shape_cast %49 : vector<1x8x4x8xf32> to vector<8x32xf32>
    %c0_15 = arith.constant 0 : index
    %c0_16 = arith.constant 0 : index
    %51 = vector.load %arg4[%c0_15, %c0_16] : memref<32x32xf32, #tpu.memory_space<vmem>>, vector<32x32xf32>
    %cst_17 = arith.constant dense<0.000000e+00> : vector<8x32xf32>
    %52 = tpu.matmul %50, %51, %cst_17 {dimension_numbers = #tpu.dot_dimension_numbers<[1], [0], [0], [1], [0, 0, 1, 1], [], []>, precision = #tpu.contract_precision<fp32>} : vector<8x32xf32>, vector<32x32xf32>, vector<8x32xf32> -> vector<8x32xf32>
    %c0_18 = arith.constant 0 : index
    %c0_19 = arith.constant 0 : index
    %53 = vector.load %arg5[%c0_18, %c0_19] : memref<1x32xf32, #tpu.memory_space<vmem>>, vector<1x32xf32>
    %54 = vector.broadcast %53 : vector<1x32xf32> to vector<8x32xf32>
    %55 = arith.addf %52, %54 : vector<8x32xf32>
    %56 = vector.shape_cast %55 : vector<8x32xf32> to vector<1x8x32xf32>
    %c0_20 = arith.constant 0 : index
    %c0_21 = arith.constant 0 : index
    %c0_22 = arith.constant 0 : index
    %57 = vector.load %arg6[%c0_20, %c0_21, %c0_22] : memref<1x8x32xf32, #tpu.memory_space<vmem>>, vector<1x8x32xf32>
    tpu.vector_store %arg6[%c0_20, %c0_21, %c0_22], %56 {strides = array<i32>} : memref<1x8x32xf32, #tpu.memory_space<vmem>>, vector<1x8x32xf32>,
    return
  }
  func.func @transform_0(%arg0: i32) -> (i32, i32, i32) {
    %c0_i32 = arith.constant 0 : i32
    %c0_i32_0 = arith.constant 0 : i32
    %c0_i32_1 = arith.constant 0 : i32
    return %arg0, %c0_i32, %c0_i32_0 : i32, i32, i32
  }
  func.func @transform_1(%arg0: i32) -> (i32, i32) {
    %c0_i32 = arith.constant 0 : i32
    %c0_i32_0 = arith.constant 0 : i32
    %c0_i32_1 = arith.constant 0 : i32
    return %c0_i32, %c0_i32_0 : i32, i32
  }
  func.func @transform_2(%arg0: i32) -> (i32, i32) {
    %c0_i32 = arith.constant 0 : i32
    %c0_i32_0 = arith.constant 0 : i32
    %c0_i32_1 = arith.constant 0 : i32
    return %c0_i32, %c0_i32_0 : i32, i32
  }
  func.func @transform_3(%arg0: i32) -> (i32, i32) {
    %c0_i32 = arith.constant 0 : i32
    %c0_i32_0 = arith.constant 0 : i32
    %c0_i32_1 = arith.constant 0 : i32
    return %c0_i32, %c0_i32_0 : i32, i32
  }
  func.func @transform_4(%arg0: i32) -> (i32, i32) {
    %c0_i32 = arith.constant 0 : i32
    %c0_i32_0 = arith.constant 0 : i32
    %c0_i32_1 = arith.constant 0 : i32
    return %c0_i32, %c0_i32_0 : i32, i32
  }
  func.func @transform_5(%arg0: i32) -> (i32, i32, i32) {
    %c0_i32 = arith.constant 0 : i32
    %c0_i32_0 = arith.constant 0 : i32
    %c0_i32_1 = arith.constant 0 : i32
    return %arg0, %c0_i32, %c0_i32_0 : i32, i32, i32
  }
}

</mosaic_0001>

<llo_original>
// kernel: tpu_custom_call.1
$region0: #{tpu_custom_call.1}
  #allocation0 [shape = 'u32[]', space=smem, size = 0x4, offset = 0x4, fixed_abs, tag = 'smem constant byte address 0x4 - core index']
  #allocation1 [shape = 'u32[72,128]{1,0:T(1,128)}', space=vmem, size = 0x9000, scoped, tag = 'internal scratch']
  %s0 = inlined_call_operand.hbm [shape: f32[2,8,32], index: 0, kind: input, shape index: {}]
  %s1 = inlined_call_operand.hbm [shape: f32[32,96], index: 1, kind: input, shape index: {}]
  %s2 = inlined_call_operand.vmem [shape: f32[1,96], index: 2, kind: input, shape index: {}]
  %s3 = inlined_call_operand.hbm [shape: f32[32,32], index: 3, kind: input, shape index: {}]
  %s4 = inlined_call_operand.vmem [shape: f32[1,32], index: 4, kind: input, shape index: {}]
  %s5 = inlined_call_operand.hbm [shape: f32[2,8,32], index: 5, kind: output, shape index: {}]
  %s6 = sld [smem:[#allocation0]]
  $region65: #{tpu_custom_call.1} parent=0
    _
  %s8 = ssub.s32 1, %s6
  %s9 = scalar_select 0, %s8, %s6
  $region1: #{tpu_custom_call.1} parent=0
    #allocation2 [shape = 'u8[8192]{0}', space=vmem, size = 0x2000, scoped, tag = 'input window, operand 0']
    #allocation3 [shape = 's32[2]{0}', space=sflag, size = 0x8, scoped, tag = 'scoped memory for tpu_custom_call.1']
    #allocation4 [shape = 's32[2]{0}', space=sflag, size = 0x8, scoped, tag = 'scoped memory for tpu_custom_call.1']
    #allocation5 [shape = 'u8[16384]{0}', space=vmem, size = 0x4000, scoped, tag = 'input window, operand 1, single buffered']
    #allocation6 [shape = 's32[1]{0}', space=sflag, size = 0x4, scoped, tag = 'scoped memory for tpu_custom_call.1']
    #allocation7 [shape = 'u8[16384]{0}', space=vmem, size = 0x4000, scoped, tag = 'input window, operand 3, single buffered']
    #allocation8 [shape = 'u8[8192]{0}', space=vmem, size = 0x2000, scoped, tag = 'output window, operand 0']
    %10 = vsyncpa [#allocation3], 0
    %s11 = scalar_lea.sflag [#allocation3], 1
    %12 = vsyncpa %s11, 0
    %13 = vsyncpa [#allocation6], 0
    %14 = vsyncpa [#allocation4], 0
    %s15 = scalar_lea.sflag [#allocation4], 1
    %16 = vsyncpa %s15, 0
    loop: start=0, step=1, limit=4
    $region2: #{tpu_custom_call.1} parent=1 // loop_pre_header
      _
    $region3: #{tpu_custom_call.1} parent=1 // loop_header
      %s18 = sphi 0, %s22
      %p19 = scmp.ge.s32.totalorder %s18, 4
      %s28 = sphi 0, %s30
      %s31 = sphi 0, %s28
      %s32 = sphi 0, %s31
      %s48 = sphi 0, %s32
      %s52 = sphi 0, %s52
      %s54 = sphi 0, %s52
      %s55 = sphi 0, %s54
      %s69 = sphi 0, %s55
      %s73 = sphi 0, %s73
      %s75 = sphi 0, %s73
      %s76 = sphi 0, %s75
      %s90 = sphi 0, %s76
      %s94 = sphi 0, %s94
      %s96 = sphi 0, %s94
      %s97 = sphi 0, %s96
      %s111 = sphi 0, %s97
      %s115 = sphi 0, %s115
      %s117 = sphi 0, %s115
      %s118 = sphi 0, %s117
      %s132 = sphi 0, %s118
      %s138 = sphi 0, %s140
      %s141 = sphi 0, %s138
      %s142 = sphi 0, %s141
      %s158 = sphi 0, %s142
    $region4: #{tpu_custom_call.1} parent=1 // loop_header_branch
      %21 = sbr.rel (%p19) target = $region8
    $region5: #{tpu_custom_call.1} parent=1 // loop_body
      %s23 = ssub.s32 %s18, 1
      %s24 = ssub.s32 %s18, 2
      %s25 = sadd.s32 %s18, 1
      %s26 = ssub.s32 %s18, %s25
      %p27 = scmp.eq.s32.totalorder %s26, 0
      %s29 = sadd.s32 %s28, 1
      %s30 = scalar_select %p27, %s28, %s29
      %p33 = pneg %p27
      %p34 = scmp.eq.s32.totalorder %s18, 1
      %p35 = por %p33, %p34
      %p36 = scmp.ne.s32.totalorder %s28, %s31
      %p37 = scmp.eq.s32.totalorder %s18, 0
      %p38 = por %p36, %p37
      %p39 = scmp.ne.s32.totalorder %s28, %s31
      %p40 = scmp.eq.s32.totalorder %s23, 1
      %p41 = por %p39, %p40
      %p42 = scmp.ne.s32.totalorder %s31, %s32
      %p43 = scmp.eq.s32.totalorder %s23, 0
      %p44 = por %p42, %p43
      %p45 = scmp.ne.s32.totalorder %s31, %s32
      %p46 = scmp.eq.s32.totalorder %s24, 1
      %p47 = por %p45, %p46
      %p49 = scmp.ne.s32.totalorder %s32, %s48
      %p50 = scmp.eq.s32.totalorder %s24, 0
      %p51 = por %p49, %p50
      %s53 = sadd.s32 %s52, 1
      %p56 = scmp.eq.s32.totalorder %s18, 1
      %p57 = scmp.ne.s32.totalorder %s52, %s54
      %p58 = scmp.eq.s32.totalorder %s18, 0
      %p59 = por %p57, %p58
      %p60 = scmp.ne.s32.totalorder %s52, %s54
      %p61 = scmp.eq.s32.totalorder %s23, 1
      %p62 = por %p60, %p61
      %p63 = scmp.ne.s32.totalorder %s54, %s55
      %p64 = scmp.eq.s32.totalorder %s23, 0
      %p65 = por %p63, %p64
      %p66 = scmp.ne.s32.totalorder %s54, %s55
      %p67 = scmp.eq.s32.totalorder %s24, 1
      %p68 = por %p66, %p67
      %p70 = scmp.ne.s32.totalorder %s55, %s69
      %p71 = scmp.eq.s32.totalorder %s24, 0
      %p72 = por %p70, %p71
      %s74 = sadd.s32 %s73, 1
      %p77 = scmp.eq.s32.totalorder %s18, 1
      %p78 = scmp.ne.s32.totalorder %s73, %s75
      %p79 = scmp.eq.s32.totalorder %s18, 0
      %p80 = por %p78, %p79
      %p81 = scmp.ne.s32.totalorder %s73, %s75
      %p82 = scmp.eq.s32.totalorder %s23, 1
      %p83 = por %p81, %p82
      %p84 = scmp.ne.s32.totalorder %s75, %s76
      %p85 = scmp.eq.s32.totalorder %s23, 0
      %p86 = por %p84, %p85
      %p87 = scmp.ne.s32.totalorder %s75, %s76
      %p88 = scmp.eq.s32.totalorder %s24, 1
      %p89 = por %p87, %p88
      %p91 = scmp.ne.s32.totalorder %s76, %s90
      %p92 = scmp.eq.s32.totalorder %s24, 0
      %p93 = por %p91, %p92
      %s95 = sadd.s32 %s94, 1
      %p98 = scmp.eq.s32.totalorder %s18, 1
      %p99 = scmp.ne.s32.totalorder %s94, %s96
      %p100 = scmp.eq.s32.totalorder %s18, 0
      %p101 = por %p99, %p100
      %p102 = scmp.ne.s32.totalorder %s94, %s96
      %p103 = scmp.eq.s32.totalorder %s23, 1
      %p104 = por %p102, %p103
      %p105 = scmp.ne.s32.totalorder %s96, %s97
      %p106 = scmp.eq.s32.totalorder %s23, 0
      %p107 = por %p105, %p106
      %p108 = scmp.ne.s32.totalorder %s96, %s97
      %p109 = scmp.eq.s32.totalorder %s24, 1
      %p110 = por %p108, %p109
      %p112 = scmp.ne.s32.totalorder %s97, %s111
      %p113 = scmp.eq.s32.totalorder %s24, 0
      %p114 = por %p112, %p113
      %s116 = sadd.s32 %s115, 1
      %p119 = scmp.eq.s32.totalorder %s18, 1
      %p120 = scmp.ne.s32.totalorder %s115, %s117
      %p121 = scmp.eq.s32.totalorder %s18, 0
      %p122 = por %p120, %p121
      %p123 = scmp.ne.s32.totalorder %s115, %s117
      %p124 = scmp.eq.s32.totalorder %s23, 1
      %p125 = por %p123, %p124
      %p126 = scmp.ne.s32.totalorder %s117, %s118
      %p127 = scmp.eq.s32.totalorder %s23, 0
      %p128 = por %p126, %p127
      %p129 = scmp.ne.s32.totalorder %s117, %s118
      %p130 = scmp.eq.s32.totalorder %s24, 1
      %p131 = por %p129, %p130
      %p133 = scmp.ne.s32.totalorder %s118, %s132
      %p134 = scmp.eq.s32.totalorder %s24, 0
      %p135 = por %p133, %p134
      %s136 = ssub.s32 %s18, %s25
      %p137 = scmp.eq.s32.totalorder %s136, 0
      %s139 = sadd.s32 %s138, 1
      %s140 = scalar_select %p137, %s138, %s139
      %p143 = pneg %p137
      %p144 = scmp.eq.s32.totalorder %s18, 1
      %p145 = por %p143, %p144
      %p146 = scmp.ne.s32.totalorder %s138, %s141
      %p147 = scmp.eq.s32.totalorder %s18, 0
      %p148 = por %p146, %p147
      %p149 = scmp.ne.s32.totalorder %s138, %s141
      %p150 = scmp.eq.s32.totalorder %s23, 1
      %p151 = por %p149, %p150
      %p152 = scmp.ne.s32.totalorder %s141, %s142
      %p153 = scmp.eq.s32.totalorder %s23, 0
      %p154 = por %p152, %p153
      %p155 = scmp.ne.s32.totalorder %s141, %s142
      %p156 = scmp.eq.s32.totalorder %s24, 1
      %p157 = por %p155, %p156
      %p159 = scmp.ne.s32.totalorder %s142, %s158
      %p160 = scmp.eq.s32.totalorder %s24, 0
      %p161 = por %p159, %p160
      %p162 = scmp.le.s32.totalorder 1, %s18
      %p163 = scmp.lt.s32.totalorder %s18, 3
      %p164 = pnand %p162, %p163
      %p165 = pneg %p164
      // Predicated region
      $region9: #{tpu_custom_call.1} parent=5 // pred_check
        _
      $region10: #{tpu_custom_call.1} parent=5 // pred_check_branch
        %167 = sbr.rel (%p164) target = $region12
      $region11: #{tpu_custom_call.1} parent=5 // pred_region
        %s168 = ssub.s32 %s18, 1
        // Predicated region
        $region13: #{tpu_custom_call.1} parent=11 // pred_check
          %p169 = pneg %p65
        $region14: #{tpu_custom_call.1} parent=11 // pred_check_branch
          %171 = sbr.rel (%p169) target = $region16
        $region15: #{tpu_custom_call.1} parent=11 // pred_region
          %173 = vsyncadd [#allocation6], 0
          %s174 = sshll.u32 %s1, 4
          %s175 = int_to_ptr.hbm [resolvable:$true] %s174
          %s176 = sshll.u32 [#allocation5], 4
          %s177 = int_to_ptr.vmem [resolvable:$true] %s176
          %182 = dma.hbm_to_vmem [thread:$0]  %s175, 512, %s177, [#allocation6], 128, 128, 8
        $region16: #{tpu_custom_call.1} parent=11 // pred_fallthru
          _
        // Predicated region
        $region17: #{tpu_custom_call.1} parent=11 // pred_check
          %p183 = pneg %p86
        $region18: #{tpu_custom_call.1} parent=11 // pred_check_branch
          %185 = sbr.rel (%p183) target = $region20
        $region19: #{tpu_custom_call.1} parent=11 // pred_region
          _
        $region20: #{tpu_custom_call.1} parent=11 // pred_fallthru
          _
        // Predicated region
        $region21: #{tpu_custom_call.1} parent=11 // pred_check
          %p186 = pneg %p107
        $region22: #{tpu_custom_call.1} parent=11 // pred_check_branch
          %188 = sbr.rel (%p186) target = $region24
        $region23: #{tpu_custom_call.1} parent=11 // pred_region
          %190 = vsyncadd [#allocation6], 0
          %s191 = sshll.u32 %s3, 4
          %s192 = int_to_ptr.hbm [resolvable:$true] %s191
          %s193 = sshll.u32 [#allocation7], 4
          %s194 = int_to_ptr.vmem [resolvable:$true] %s193
          %199 = dma.hbm_to_vmem [thread:$0]  %s192, 512, %s194, [#allocation6], 128, 128, 8
        $region24: #{tpu_custom_call.1} parent=11 // pred_fallthru
          _
        // Predicated region
        $region25: #{tpu_custom_call.1} parent=11 // pred_check
          %p200 = pneg %p128
        $region26: #{tpu_custom_call.1} parent=11 // pred_check_branch
          %202 = sbr.rel (%p200) target = $region28
        $region27: #{tpu_custom_call.1} parent=11 // pred_region
          _
        $region28: #{tpu_custom_call.1} parent=11 // pred_fallthru
          _
      $region12: #{tpu_custom_call.1} parent=5 // pred_fallthru
        _
      %p203 = scmp.lt.s32.totalorder %s18, 2
      // Predicated region
      $region29: #{tpu_custom_call.1} parent=5 // pred_check
        %p204 = pneg %p203
      $region30: #{tpu_custom_call.1} parent=5 // pred_check_branch
        %206 = sbr.rel (%p204) target = $region32
      $region31: #{tpu_custom_call.1} parent=5 // pred_region
        // Predicated region
        $region33: #{tpu_custom_call.1} parent=31 // pred_check
          %p207 = pneg %p38
        $region34: #{tpu_custom_call.1} parent=31 // pred_check_branch
          %209 = sbr.rel (%p207) target = $region36
        $region35: #{tpu_custom_call.1} parent=31 // pred_region
          %s210 = sand.u32 %s28, 1
          %s211 = scalar_lea.sflag [#allocation3], %s210
          %s212 = sand.u32 %s28, 1
          %s213 = smul.addr %s212, 8
          %s214 = scalar_lea.vmem [#allocation2], %s213
          %216 = vsyncadd %s211, 0
          %s217 = smul.addr %s18, 8
          %s218 = scalar_lea.hbm %s0, %s217
          %s220 = sshll.u32 %s218, 4
          %s221 = int_to_ptr.hbm [resolvable:$true] %s220
          %s222 = sshll.u32 %s214, 4
          %s223 = int_to_ptr.vmem [resolvable:$true] %s222
          %225 = dma.hbm_to_vmem [thread:$0]  %s221, 128, %s223, %s211
        $region36: #{tpu_custom_call.1} parent=31 // pred_fallthru
          _
      $region32: #{tpu_custom_call.1} parent=5 // pred_fallthru
        _
      %p226 = scmp.le.s32.totalorder 1, %s18
      %p227 = scmp.lt.s32.totalorder %s18, 3
      %p228 = pnand %p226, %p227
      %p229 = pneg %p228
      // Predicated region
      $region37: #{tpu_custom_call.1} parent=5 // pred_check
        _
      $region38: #{tpu_custom_call.1} parent=5 // pred_check_branch
        %231 = sbr.rel (%p228) target = $region40
      $region39: #{tpu_custom_call.1} parent=5 // pred_region
        %s232 = ssub.s32 %s18, 1
        %s233 = sand.u32 %s31, 1
        %s234 = scalar_lea.sflag [#allocation3], %s233
        %s235 = sand.u32 %s31, 1
        %s236 = smul.addr %s235, 8
        %s237 = scalar_lea.vmem [#allocation2], %s236
        // Predicated region
        $region41: #{tpu_custom_call.1} parent=39 // pred_check
          %p238 = pneg %p44
        $region42: #{tpu_custom_call.1} parent=39 // pred_check_branch
          %240 = sbr.rel (%p238) target = $region44
        $region43: #{tpu_custom_call.1} parent=39 // pred_region
          %242 = dma.done %s234, 128
        $region44: #{tpu_custom_call.1} parent=39 // pred_fallthru
          _
        // Predicated region
        $region45: #{tpu_custom_call.1} parent=39 // pred_check
          %p243 = pneg %p65
        $region46: #{tpu_custom_call.1} parent=39 // pred_check_branch
          %245 = sbr.rel (%p243) target = $region48
        $region47: #{tpu_custom_call.1} parent=39 // pred_region
          %247 = dma.done [#allocation6], 512
        $region48: #{tpu_custom_call.1} parent=39 // pred_fallthru
          _
        // Predicated region
        $region49: #{tpu_custom_call.1} parent=39 // pred_check
          %p248 = pneg %p107
        $region50: #{tpu_custom_call.1} parent=39 // pred_check_branch
          %250 = sbr.rel (%p248) target = $region52
        $region51: #{tpu_custom_call.1} parent=39 // pred_region
          %252 = dma.done [#allocation6], 512
        $region52: #{tpu_custom_call.1} parent=39 // pred_fallthru
          _
        %s253 = sand.u32 %s31, 1
        %s254 = scalar_lea.sflag [#allocation3], %s253
        %s255 = sand.u32 %s31, 1
        %s256 = smul.addr %s255, 8
        %s257 = scalar_lea.vmem [#allocation2], %s256
        %p258 = pneg %p44
        %p259 = pneg %p41
        %p260 = pneg %p65
        %p261 = pneg %p62
        %p262 = pneg %p86
        %p263 = pneg %p83
        %p264 = pneg %p107
        %p265 = pneg %p104
        %p266 = pneg %p128
        %p267 = pneg %p125
        %p268 = pneg %p154
        %p269 = pneg %p151
        %s270 = sand.u32 %s141, 1
        %s271 = scalar_lea.sflag [#allocation4], %s270
        %s272 = sand.u32 %s141, 1
        %s273 = smul.addr %s272, 8
        %s274 = scalar_lea.vmem [#allocation8], %s273
        %v275 = vld [vmem:[%s237] sm:$0xff]
        %vm276 = vcmask 261120
        %v277 = vsel %vm276, %v275, 0.0
        %278 = vadd.xlane.f32.xlu0 %v277
        %v279 = vpop.xlane.xlu0 %278
        %v280 = vrcp.pop 32.0
        %v281 = vmul.f32 32.0, %v280
        %v282 = vsub.f32 1.0, %v281
        %v283 = vmul.f32 %v280, %v282
        %v284 = vadd.f32 %v280, %v283
        %vm285 = vweird.f32 %v280
        %v286 = vsel %vm285, %v280, %v284
        %v287 = vmul.f32 %v279, %v286
        %v288 = vsub.f32 %v275, %v287
        %v289 = vmul.f32 %v288, %v288
        %v290 = vsel %vm276, %v289, 0.0
        %291 = vadd.xlane.f32.xlu0 %v290
        %v292 = vpop.xlane.xlu0 %291
        %v293 = vmul.f32 %v292, %v286
        %v294 = vadd.f32 %v293, 1e-05
        %v295 = vrsqrt.pop %v294
        %v296 = vmul.f32 %v295, %v294
        %v297 = vmul.f32 %v296, %v295
        %v298 = vmul.f32 0.5, %v297
        %v299 = vsub.f32 1.5, %v298
        %v300 = vmul.f32 %v295, %v299
        %vm301 = vweird.f32 %v294
        %vm302 = vweird.f32 %v295
        %vm303 = vmor %vm301, %vm302
        %v304 = vsel %vm303, %v295, %v300
        %v305 = vmul.f32 %v288, %v304
        %v306 = vld [vmem:[#allocation5] sm:$0xff]
        %v307 = vld [vmem:[#allocation5 + $0x8] sm:$0xff]
        %v308 = vld [vmem:[#allocation5 + $0x10] sm:$0xff]
        %v309 = vld [vmem:[#allocation5 + $0x18] sm:$0xff]
        %v310 = vld [vmem:[%s2] sm:$0x1]
        %v312 = vperm.slane %v310, 0
        %v315 = vsel %vm276, %v305, 0
        %317 = vmatpush.msra.mxu0 0.0
        %318 = vmatpush.msra.mxu0 0.0
        %319 = vmatpush.msra.mxu0 0.0
        %320 = vmatpush.msra.mxu0 0.0
        %321 = vmatpush.msra.mxu0 0.0
        %322 = vmatpush.msra.mxu0 0.0
        %323 = vmatpush.msra.mxu0 0.0
        %324 = vmatpush.msra.mxu0 0.0
        %325 = vmatpush.msra.mxu0 0.0
        %326 = vmatpush.msra.mxu0 0.0
        %327 = vmatpush.msra.mxu0 0.0
        %328 = vmatpush.msra.mxu0 0.0
        %v329 = vand.u32 %v309, 4294901760
        %330 = vmatpush.msra.mxu0 %v329
        %v331 = vand.u32 %v308, 4294901760
        %332 = vmatpush.msra.mxu0 %v331
        %v333 = vand.u32 %v307, 4294901760
        %334 = vmatpush.msra.mxu0 %v333
        %v335 = vand.u32 %v306, 4294901760
        %336 = vmatpush.msra.mxu0 %v335
        %v337 = vand.u32 %v315, 4294901760
        %v338 = vsub.f32 %v315, %v337
        %v339 = vand.u32 %v338, 4294901760
        %v340 = vsub.f32 %v338, %v339
        %v341 = vand.u32 %v340, 4294901760
        %342 = vmatmul.f32.gmra.mxu0 %v341
        %v343 = vpop.f32.mrf.mxu0
        %v344 = vadd.f32 %v312, %v343
        %345 = vdwg.mxu0
        %346 = vmatpush.msra.mxu0 0.0
        %347 = vmatpush.msra.mxu0 0.0
        %348 = vmatpush.msra.mxu0 0.0
        %349 = vmatpush.msra.mxu0 0.0
        %350 = vmatpush.msra.mxu0 0.0
        %351 = vmatpush.msra.mxu0 0.0
        %352 = vmatpush.msra.mxu0 0.0
        %353 = vmatpush.msra.mxu0 0.0
        %354 = vmatpush.msra.mxu0 0.0
        %355 = vmatpush.msra.mxu0 0.0
        %356 = vmatpush.msra.mxu0 0.0
        %357 = vmatpush.msra.mxu0 0.0
        %v358 = vand.u32 %v309, 4294901760
        %v359 = vsub.f32 %v309, %v358
        %v360 = vand.u32 %v359, 4294901760
        %v361 = vsub.f32 %v359, %v360
        %v362 = vand.u32 %v361, 4294901760
        %363 = vmatpush.msra.mxu0 %v362
        %v364 = vand.u32 %v308, 4294901760
        %v365 = vsub.f32 %v308, %v364
        %v366 = vand.u32 %v365, 4294901760
        %v367 = vsub.f32 %v365, %v366
        %v368 = vand.u32 %v367, 4294901760
        %369 = vmatpush.msra.mxu0 %v368
        %v370 = vand.u32 %v307, 4294901760
        %v371 = vsub.f32 %v307, %v370
        %v372 = vand.u32 %v371, 4294901760
        %v373 = vsub.f32 %v371, %v372
        %v374 = vand.u32 %v373, 4294901760
        %375 = vmatpush.msra.mxu0 %v374
        %v376 = vand.u32 %v306, 4294901760
        %v377 = vsub.f32 %v306, %v376
        %v378 = vand.u32 %v377, 4294901760
        %v379 = vsub.f32 %v377, %v378
        %v380 = vand.u32 %v379, 4294901760
        %381 = vmatpush.msra.mxu0 %v380
        %v382 = vand.u32 %v315, 4294901760
        %383 = vmatmul.f32.gmra.mxu0 %v382
        %v384 = vpop.f32.mrf.mxu0
        %v385 = vadd.f32 %v344, %v384
        %386 = vdwg.mxu0
        %387 = vmatpush.msra.mxu0 0.0
        %388 = vmatpush.msra.mxu0 0.0
        %389 = vmatpush.msra.mxu0 0.0
        %390 = vmatpush.msra.mxu0 0.0
        %391 = vmatpush.msra.mxu0 0.0
        %392 = vmatpush.msra.mxu0 0.0
        %393 = vmatpush.msra.mxu0 0.0
        %394 = vmatpush.msra.mxu0 0.0
        %395 = vmatpush.msra.mxu0 0.0
        %396 = vmatpush.msra.mxu0 0.0
        %397 = vmatpush.msra.mxu0 0.0
        %398 = vmatpush.msra.mxu0 0.0
        %v399 = vand.u32 %v309, 4294901760
        %v400 = vsub.f32 %v309, %v399
        %401 = vmatpush.msra.mxu0 %v400
        %v402 = vand.u32 %v308, 4294901760
        %v403 = vsub.f32 %v308, %v402
        %404 = vmatpush.msra.mxu0 %v403
        %v405 = vand.u32 %v307, 4294901760
        %v406 = vsub.f32 %v307, %v405
        %407 = vmatpush.msra.mxu0 %v406
        %v408 = vand.u32 %v306, 4294901760
        %v409 = vsub.f32 %v306, %v408
        %410 = vmatpush.msra.mxu0 %v409
        %v411 = vand.u32 %v315, 4294901760
        %v412 = vsub.f32 %v315, %v411
        %413 = vmatmul.f32.gmra.mxu0 %v412
        %v414 = vpop.f32.mrf.mxu0
        %v415 = vadd.f32 %v385, %v414
        %416 = vdwg.mxu0
        %417 = vmatpush.msra.mxu0 0.0
        %418 = vmatpush.msra.mxu0 0.0
        %419 = vmatpush.msra.mxu0 0.0
        %420 = vmatpush.msra.mxu0 0.0
        %421 = vmatpush.msra.mxu0 0.0
        %422 = vmatpush.msra.mxu0 0.0
        %423 = vmatpush.msra.mxu0 0.0
        %424 = vmatpush.msra.mxu0 0.0
        %425 = vmatpush.msra.mxu0 0.0
        %426 = vmatpush.msra.mxu0 0.0
        %427 = vmatpush.msra.mxu0 0.0
        %428 = vmatpush.msra.mxu0 0.0
        %v429 = vand.u32 %v309, 4294901760
        %430 = vmatpush.msra.mxu0 %v429
        %v431 = vand.u32 %v308, 4294901760
        %432 = vmatpush.msra.mxu0 %v431
        %v433 = vand.u32 %v307, 4294901760
        %434 = vmatpush.msra.mxu0 %v433
        %v435 = vand.u32 %v306, 4294901760
        %436 = vmatpush.msra.mxu0 %v435
        %v437 = vand.u32 %v315, 4294901760
        %v438 = vsub.f32 %v315, %v437
        %v439 = vand.u32 %v438, 4294901760
        %440 = vmatmul.f32.gmra.mxu0 %v439
        %v441 = vpop.f32.mrf.mxu0
        %v442 = vadd.f32 %v415, %v441
        %443 = vdwg.mxu0
        %444 = vmatpush.msra.mxu0 0.0
        %445 = vmatpush.msra.mxu0 0.0
        %446 = vmatpush.msra.mxu0 0.0
        %447 = vmatpush.msra.mxu0 0.0
        %448 = vmatpush.msra.mxu0 0.0
        %449 = vmatpush.msra.mxu0 0.0
        %450 = vmatpush.msra.mxu0 0.0
        %451 = vmatpush.msra.mxu0 0.0
        %452 = vmatpush.msra.mxu0 0.0
        %453 = vmatpush.msra.mxu0 0.0
        %454 = vmatpush.msra.mxu0 0.0
        %455 = vmatpush.msra.mxu0 0.0
        %v456 = vand.u32 %v309, 4294901760
        %v457 = vsub.f32 %v309, %v456
        %v458 = vand.u32 %v457, 4294901760
        %459 = vmatpush.msra.mxu0 %v458
        %v460 = vand.u32 %v308, 4294901760
        %v461 = vsub.f32 %v308, %v460
        %v462 = vand.u32 %v461, 4294901760
        %463 = vmatpush.msra.mxu0 %v462
        %v464 = vand.u32 %v307, 4294901760
        %v465 = vsub.f32 %v307, %v464
        %v466 = vand.u32 %v465, 4294901760
        %467 = vmatpush.msra.mxu0 %v466
        %v468 = vand.u32 %v306, 4294901760
        %v469 = vsub.f32 %v306, %v468
        %v470 = vand.u32 %v469, 4294901760
        %471 = vmatpush.msra.mxu0 %v470
        %v472 = vand.u32 %v315, 4294901760
        %473 = vmatmul.f32.gmra.mxu0 %v472
        %v474 = vpop.f32.mrf.mxu0
        %v475 = vadd.f32 %v442, %v474
        %476 = vdwg.mxu0
        %477 = vmatpush.msra.mxu0 0.0
        %478 = vmatpush.msra.mxu0 0.0
        %479 = vmatpush.msra.mxu0 0.0
        %480 = vmatpush.msra.mxu0 0.0
        %481 = vmatpush.msra.mxu0 0.0
        %482 = vmatpush.msra.mxu0 0.0
        %483 = vmatpush.msra.mxu0 0.0
        %484 = vmatpush.msra.mxu0 0.0
        %485 = vmatpush.msra.mxu0 0.0
        %486 = vmatpush.msra.mxu0 0.0
        %487 = vmatpush.msra.mxu0 0.0
        %488 = vmatpush.msra.mxu0 0.0
        %v489 = vand.u32 %v309, 4294901760
        %490 = vmatpush.msra.mxu0 %v489
        %v491 = vand.u32 %v308, 4294901760
        %492 = vmatpush.msra.mxu0 %v491
        %v493 = vand.u32 %v307, 4294901760
        %494 = vmatpush.msra.mxu0 %v493
        %v495 = vand.u32 %v306, 4294901760
        %496 = vmatpush.msra.mxu0 %v495
        %v497 = vand.u32 %v315, 4294901760
        %498 = vmatmul.f32.gmra.mxu0 %v497
        %v499 = vpop.f32.mrf.mxu0
        %v500 = vadd.f32 %v475, %v499
        %501 = vdwg.mxu0
        %503 = vrot.lane.b32.xlu0 %v500, 120
        %v504 = vpop.permute.xlu0 %503
        %506 = vrot.lane.b32.xlu0 %v500, 112
        %v507 = vpop.permute.xlu0 %506
        %509 = vrot.lane.b32.xlu0 %v500, 104
        %v510 = vpop.permute.xlu0 %509
        %v512 = vrot.slane %v507, 4
        %vm513 = vcmask 1047556
        %v514 = vsel %vm513, %v512, %v500
        %v515 = vrot.slane %v500, 4
        %v516 = vsel %vm513, %v507, %v515
        %v518 = vunpack.c.l.s4 1983009808
        %v519 = vunpack.c.0.s8 %v518
        %v520 = vperm.slane %v514, %v519
        %v522 = vunpack.c.l.s4 1983009808
        %v523 = vunpack.c.0.s8 %v522
        %v524 = vperm.slane %v516, %v523
        %v525 = vrot.slane %v510, 4
        %v526 = vsel %vm513, %v525, %v504
        %v527 = vrot.slane %v504, 4
        %v528 = vsel %vm513, %v510, %v527
        %v530 = vunpack.c.l.s4 1983009808
        %v531 = vunpack.c.0.s8 %v530
        %v532 = vperm.slane %v526, %v531
        %v534 = vunpack.c.l.s4 1983009808
        %v535 = vunpack.c.0.s8 %v534
        %v536 = vperm.slane %v528, %v535
        %v537 = vrot.slane %v532, 4
        %v538 = vsel %vm513, %v537, %v520
        %v539 = vrot.slane %v520, 4
        %v540 = vsel %vm513, %v532, %v539
        %v542 = vunpack.c.l.s4 1934713408
        %v543 = vunpack.c.0.s8 %v542
        %v544 = vperm.slane %v538, %v543
        %v546 = vunpack.c.l.s4 1934713408
        %v547 = vunpack.c.0.s8 %v546
        %v548 = vperm.slane %v540, %v547
        %v549 = vrot.slane %v536, 4
        %v550 = vsel %vm513, %v549, %v524
        %v551 = vrot.slane %v524, 4
        %v552 = vsel %vm513, %v536, %v551
        %v554 = vunpack.c.l.s4 1934713408
        %v555 = vunpack.c.0.s8 %v554
        %v556 = vperm.slane %v550, %v555
        %v558 = vunpack.c.l.s4 1934713408
        %v559 = vunpack.c.0.s8 %v558
        %v560 = vperm.slane %v552, %v559
        %v561 = vrot.slane %v544, 4
        %v562 = vsel %vm513, 0.0, %v561
        %v563 = vrot.slane %v548, 4
        %v564 = vsel %vm513, 0.0, %v563
        %v565 = vrot.slane %v556, 4
        %v566 = vsel %vm513, 0.0, %v565
        %v567 = vrot.slane %v560, 4
        %v568 = vsel %vm513, 0.0, %v567
        %v569 = vsel %vm513, %v563, %v544
        %v571 = vunpack.c.l.s4 1983009808
        %v572 = vunpack.c.0.s8 %v571
        %v573 = vperm.slane %v569, %v572
        %v574 = vrot.slane %v564, 4
        %v575 = vsel %vm513, %v574, %v562
        %v577 = vunpack.c.l.s4 1983009808
        %v578 = vunpack.c.0.s8 %v577
        %v579 = vperm.slane %v575, %v578
        %v580 = vsel %vm513, %v567, %v556
        %v582 = vunpack.c.l.s4 1983009808
        %v583 = vunpack.c.0.s8 %v582
        %v584 = vperm.slane %v580, %v583
        %v585 = vrot.slane %v568, 4
        %v586 = vsel %vm513, %v585, %v566
        %v588 = vunpack.c.l.s4 1983009808
        %v589 = vunpack.c.0.s8 %v588
        %v590 = vperm.slane %v586, %v589
        %v591 = vrot.slane %v579, 4
        %v592 = vsel %vm513, %v591, %v573
        %v593 = vrot.slane %v573, 4
        %v594 = vsel %vm513, %v579, %v593
        %v596 = vunpack.c.l.s4 1934713408
        %v597 = vunpack.c.0.s8 %v596
        %v598 = vperm.slane %v592, %v597
        %v600 = vunpack.c.l.s4 1934713408
        %v601 = vunpack.c.0.s8 %v600
        %v602 = vperm.slane %v594, %v601
        %v603 = vrot.slane %v590, 4
        %v604 = vsel %vm513, %v603, %v584
        %v605 = vrot.slane %v584, 4
        %v606 = vsel %vm513, %v590, %v605
        %v608 = vunpack.c.l.s4 1934713408
        %v609 = vunpack.c.0.s8 %v608
        %v610 = vperm.slane %v604, %v609
        %v612 = vunpack.c.l.s4 1934713408
        %v613 = vunpack.c.0.s8 %v612
        %v614 = vperm.slane %v606, %v613
        %v615 = vrot.slane %v610, 4
        %v616 = vsel %vm513, %v615, %v598
        %v617 = vrot.slane %v598, 4
        %v618 = vsel %vm513, %v610, %v617
        %v619 = vrot.slane %v614, 4
        %v620 = vsel %vm513, %v619, %v602
        %v621 = vrot.slane %v602, 4
        %v622 = vsel %vm513, %v614, %v621
        %623 = vrot.lane.b32.xlu0 %v500, 96
        %v624 = vpop.permute.xlu0 %623
        %625 = vrot.lane.b32.xlu0 %v504, 96
        %v626 = vpop.permute.xlu0 %625
        %627 = vrot.lane.b32.xlu0 %v507, 96
        %v628 = vpop.permute.xlu0 %627
        %629 = vrot.lane.b32.xlu0 %v510, 96
        %v630 = vpop.permute.xlu0 %629
        %v635 = vrot.slane %v628, 4
        %v636 = vsel %vm513, %v635, %v624
        %v637 = vrot.slane %v624, 4
        %v638 = vsel %vm513, %v628, %v637
        %v640 = vunpack.c.l.s4 1983009808
        %v641 = vunpack.c.0.s8 %v640
        %v642 = vperm.slane %v636, %v641
        %v644 = vunpack.c.l.s4 1983009808
        %v645 = vunpack.c.0.s8 %v644
        %v646 = vperm.slane %v638, %v645
        %v647 = vrot.slane %v630, 4
        %v648 = vsel %vm513, %v647, %v626
        %v649 = vrot.slane %v626, 4
        %v650 = vsel %vm513, %v630, %v649
        %v652 = vunpack.c.l.s4 1983009808
        %v653 = vunpack.c.0.s8 %v652
        %v654 = vperm.slane %v648, %v653
        %v656 = vunpack.c.l.s4 1983009808
        %v657 = vunpack.c.0.s8 %v656
        %v658 = vperm.slane %v650, %v657
        %v659 = vrot.slane %v654, 4
        %v660 = vsel %vm513, %v659, %v642
        %v661 = vrot.slane %v642, 4
        %v662 = vsel %vm513, %v654, %v661
        %v664 = vunpack.c.l.s4 1934713408
        %v665 = vunpack.c.0.s8 %v664
        %v666 = vperm.slane %v660, %v665
        %v668 = vunpack.c.l.s4 1934713408
        %v669 = vunpack.c.0.s8 %v668
        %v670 = vperm.slane %v662, %v669
        %v671 = vrot.slane %v658, 4
        %v672 = vsel %vm513, %v671, %v646
        %v673 = vrot.slane %v646, 4
        %v674 = vsel %vm513, %v658, %v673
        %v676 = vunpack.c.l.s4 1934713408
        %v677 = vunpack.c.0.s8 %v676
        %v678 = vperm.slane %v672, %v677
        %v680 = vunpack.c.l.s4 1934713408
        %v681 = vunpack.c.0.s8 %v680
        %v682 = vperm.slane %v674, %v681
        %v683 = vrot.slane %v666, 4
        %v684 = vsel %vm513, 0.0, %v683
        %v685 = vrot.slane %v670, 4
        %v686 = vsel %vm513, 0.0, %v685
        %v687 = vrot.slane %v678, 4
        %v688 = vsel %vm513, 0.0, %v687
        %v689 = vrot.slane %v682, 4
        %v690 = vsel %vm513, 0.0, %v689
        %v691 = vsel %vm513, %v685, %v666
        %v693 = vunpack.c.l.s4 1983009808
        %v694 = vunpack.c.0.s8 %v693
        %v695 = vperm.slane %v691, %v694
        %v696 = vrot.slane %v686, 4
        %v697 = vsel %vm513, %v696, %v684
        %v699 = vunpack.c.l.s4 1983009808
        %v700 = vunpack.c.0.s8 %v699
        %v701 = vperm.slane %v697, %v700
        %v702 = vsel %vm513, %v689, %v678
        %v704 = vunpack.c.l.s4 1983009808
        %v705 = vunpack.c.0.s8 %v704
        %v706 = vperm.slane %v702, %v705
        %v707 = vrot.slane %v690, 4
        %v708 = vsel %vm513, %v707, %v688
        %v710 = vunpack.c.l.s4 1983009808
        %v711 = vunpack.c.0.s8 %v710
        %v712 = vperm.slane %v708, %v711
        %v713 = vrot.slane %v701, 4
        %v714 = vsel %vm513, %v713, %v695
        %v715 = vrot.slane %v695, 4
        %v716 = vsel %vm513, %v701, %v715
        %v718 = vunpack.c.l.s4 1934713408
        %v719 = vunpack.c.0.s8 %v718
        %v720 = vperm.slane %v714, %v719
        %v722 = vunpack.c.l.s4 1934713408
        %v723 = vunpack.c.0.s8 %v722
        %v724 = vperm.slane %v716, %v723
        %v725 = vrot.slane %v712, 4
        %v726 = vsel %vm513, %v725, %v706
        %v727 = vrot.slane %v706, 4
        %v728 = vsel %vm513, %v712, %v727
        %v730 = vunpack.c.l.s4 1934713408
        %v731 = vunpack.c.0.s8 %v730
        %v732 = vperm.slane %v726, %v731
        %v734 = vunpack.c.l.s4 1934713408
        %v735 = vunpack.c.0.s8 %v734
        %v736 = vperm.slane %v728, %v735
        %v737 = vrot.slane %v732, 4
        %v738 = vsel %vm513, %v737, %v720
        %v739 = vrot.slane %v720, 4
        %v740 = vsel %vm513, %v732, %v739
        %v741 = vrot.slane %v736, 4
        %v742 = vsel %vm513, %v741, %v724
        %v743 = vrot.slane %v724, 4
        %v744 = vsel %vm513, %v736, %v743
        %745 = vrot.lane.b32.xlu0 %v500, 64
        %v746 = vpop.permute.xlu0 %745
        %747 = vrot.lane.b32.xlu0 %v504, 64
        %v748 = vpop.permute.xlu0 %747
        %749 = vrot.lane.b32.xlu0 %v507, 64
        %v750 = vpop.permute.xlu0 %749
        %751 = vrot.lane.b32.xlu0 %v510, 64
        %v752 = vpop.permute.xlu0 %751
        %v757 = vrot.slane %v750, 4
        %v758 = vsel %vm513, %v757, %v746
        %v759 = vrot.slane %v746, 4
        %v760 = vsel %vm513, %v750, %v759
        %v762 = vunpack.c.l.s4 1983009808
        %v763 = vunpack.c.0.s8 %v762
        %v764 = vperm.slane %v758, %v763
        %v766 = vunpack.c.l.s4 1983009808
        %v767 = vunpack.c.0.s8 %v766
        %v768 = vperm.slane %v760, %v767
        %v769 = vrot.slane %v752, 4
        %v770 = vsel %vm513, %v769, %v748
        %v771 = vrot.slane %v748, 4
        %v772 = vsel %vm513, %v752, %v771
        %v774 = vunpack.c.l.s4 1983009808
        %v775 = vunpack.c.0.s8 %v774
        %v776 = vperm.slane %v770, %v775
        %v778 = vunpack.c.l.s4 1983009808
        %v779 = vunpack.c.0.s8 %v778
        %v780 = vperm.slane %v772, %v779
        %v781 = vrot.slane %v776, 4
        %v782 = vsel %vm513, %v781, %v764
        %v783 = vrot.slane %v764, 4
        %v784 = vsel %vm513, %v776, %v783
        %v786 = vunpack.c.l.s4 1934713408
        %v787 = vunpack.c.0.s8 %v786
        %v788 = vperm.slane %v782, %v787
        %v790 = vunpack.c.l.s4 1934713408
        %v791 = vunpack.c.0.s8 %v790
        %v792 = vperm.slane %v784, %v791
        %v793 = vrot.slane %v780, 4
        %v794 = vsel %vm513, %v793, %v768
        %v795 = vrot.slane %v768, 4
        %v796 = vsel %vm513, %v780, %v795
        %v798 = vunpack.c.l.s4 1934713408
        %v799 = vunpack.c.0.s8 %v798
        %v800 = vperm.slane %v794, %v799
        %v802 = vunpack.c.l.s4 1934713408
        %v803 = vunpack.c.0.s8 %v802
        %v804 = vperm.slane %v796, %v803
        %v805 = vrot.slane %v788, 4
        %v806 = vsel %vm513, 0.0, %v805
        %v807 = vrot.slane %v792, 4
        %v808 = vsel %vm513, 0.0, %v807
        %v809 = vrot.slane %v800, 4
        %v810 = vsel %vm513, 0.0, %v809
        %v811 = vrot.slane %v804, 4
        %v812 = vsel %vm513, 0.0, %v811
        %v813 = vsel %vm513, %v807, %v788
        %v815 = vunpack.c.l.s4 1983009808
        %v816 = vunpack.c.0.s8 %v815
        %v817 = vperm.slane %v813, %v816
        %v818 = vrot.slane %v808, 4
        %v819 = vsel %vm513, %v818, %v806
        %v821 = vunpack.c.l.s4 1983009808
        %v822 = vunpack.c.0.s8 %v821
        %v823 = vperm.slane %v819, %v822
        %v824 = vsel %vm513, %v811, %v800
        %v826 = vunpack.c.l.s4 1983009808
        %v827 = vunpack.c.0.s8 %v826
        %v828 = vperm.slane %v824, %v827
        %v829 = vrot.slane %v812, 4
        %v830 = vsel %vm513, %v829, %v810
        %v832 = vunpack.c.l.s4 1983009808
        %v833 = vunpack.c.0.s8 %v832
        %v834 = vperm.slane %v830, %v833
        %v835 = vrot.slane %v823, 4
        %v836 = vsel %vm513, %v835, %v817
        %v837 = vrot.slane %v817, 4
        %v838 = vsel %vm513, %v823, %v837
        %v840 = vunpack.c.l.s4 1934713408
        %v841 = vunpack.c.0.s8 %v840
        %v842 = vperm.slane %v836, %v841
        %v844 = vunpack.c.l.s4 1934713408
        %v845 = vunpack.c.0.s8 %v844
        %v846 = vperm.slane %v838, %v845
        %v847 = vrot.slane %v834, 4
        %v848 = vsel %vm513, %v847, %v828
        %v849 = vrot.slane %v828, 4
        %v850 = vsel %vm513, %v834, %v849
        %v852 = vunpack.c.l.s4 1934713408
        %v853 = vunpack.c.0.s8 %v852
        %v854 = vperm.slane %v848, %v853
        %v856 = vunpack.c.l.s4 1934713408
        %v857 = vunpack.c.0.s8 %v856
        %v858 = vperm.slane %v850, %v857
        %v859 = vrot.slane %v854, 4
        %v860 = vsel %vm513, %v859, %v842
        %v861 = vrot.slane %v842, 4
        %v862 = vsel %vm513, %v854, %v861
        %v863 = vrot.slane %v858, 4
        %v864 = vsel %vm513, %v863, %v846
        %v865 = vrot.slane %v846, 4
        %v866 = vsel %vm513, %v858, %v865
        %vm867 = vcmask 64512
        %v869 = vsel %vm867, %v616, 0
        %v872 = vsel %vm867, %v738, 0
        %874 = vmatpush.xpose.msra.mxu0 0.0
        %875 = vmatpush.xpose.msra.mxu0 0.0
        %876 = vmatpush.xpose.msra.mxu0 0.0
        %877 = vmatpush.xpose.msra.mxu0 0.0
        %878 = vmatpush.xpose.msra.mxu0 0.0
        %879 = vmatpush.xpose.msra.mxu0 0.0
        %880 = vmatpush.xpose.msra.mxu0 0.0
        %881 = vmatpush.xpose.msra.mxu0 0.0
        %882 = vmatpush.xpose.msra.mxu0 0.0
        %883 = vmatpush.xpose.msra.mxu0 0.0
        %884 = vmatpush.xpose.msra.mxu0 0.0
        %885 = vmatpush.xpose.msra.mxu0 0.0
        %886 = vmatpush.xpose.msra.mxu0 0.0
        %887 = vmatpush.xpose.msra.mxu0 0.0
        %888 = vmatpush.xpose.msra.mxu0 0.0
        %v889 = vand.u32 %v872, 4294901760
        %890 = vmatpush.xpose.msra.mxu0 %v889
        %v891 = vand.u32 %v869, 4294901760
        %v892 = vsub.f32 %v869, %v891
        %v893 = vand.u32 %v892, 4294901760
        %v894 = vsub.f32 %v892, %v893
        %v895 = vand.u32 %v894, 4294901760
        %896 = vmatmul.f32.gmra.mxu0 %v895
        %v897 = vpop.f32.mrf.mxu0
        %v898 = vadd.f32 0.0, %v897
        %899 = vdwg.mxu0
        %900 = vmatpush.xpose.msra.mxu0 0.0
        %901 = vmatpush.xpose.msra.mxu0 0.0
        %902 = vmatpush.xpose.msra.mxu0 0.0
        %903 = vmatpush.xpose.msra.mxu0 0.0
        %904 = vmatpush.xpose.msra.mxu0 0.0
        %905 = vmatpush.xpose.msra.mxu0 0.0
        %906 = vmatpush.xpose.msra.mxu0 0.0
        %907 = vmatpush.xpose.msra.mxu0 0.0
        %908 = vmatpush.xpose.msra.mxu0 0.0
        %909 = vmatpush.xpose.msra.mxu0 0.0
        %910 = vmatpush.xpose.msra.mxu0 0.0
        %911 = vmatpush.xpose.msra.mxu0 0.0
        %912 = vmatpush.xpose.msra.mxu0 0.0
        %913 = vmatpush.xpose.msra.mxu0 0.0
        %914 = vmatpush.xpose.msra.mxu0 0.0
        %v915 = vand.u32 %v872, 4294901760
        %v916 = vsub.f32 %v872, %v915
        %v917 = vand.u32 %v916, 4294901760
        %v918 = vsub.f32 %v916, %v917
        %v919 = vand.u32 %v918, 4294901760
        %920 = vmatpush.xpose.msra.mxu0 %v919
        %v921 = vand.u32 %v869, 4294901760
        %922 = vmatmul.f32.gmra.mxu0 %v921
        %v923 = vpop.f32.mrf.mxu0
        %v924 = vadd.f32 %v898, %v923
        %925 = vdwg.mxu0
        %926 = vmatpush.xpose.msra.mxu0 0.0
        %927 = vmatpush.xpose.msra.mxu0 0.0
        %928 = vmatpush.xpose.msra.mxu0 0.0
        %929 = vmatpush.xpose.msra.mxu0 0.0
        %930 = vmatpush.xpose.msra.mxu0 0.0
        %931 = vmatpush.xpose.msra.mxu0 0.0
        %932 = vmatpush.xpose.msra.mxu0 0.0
        %933 = vmatpush.xpose.msra.mxu0 0.0
        %934 = vmatpush.xpose.msra.mxu0 0.0
        %935 = vmatpush.xpose.msra.mxu0 0.0
        %936 = vmatpush.xpose.msra.mxu0 0.0
        %937 = vmatpush.xpose.msra.mxu0 0.0
        %938 = vmatpush.xpose.msra.mxu0 0.0
        %939 = vmatpush.xpose.msra.mxu0 0.0
        %940 = vmatpush.xpose.msra.mxu0 0.0
        %v941 = vand.u32 %v872, 4294901760
        %v942 = vsub.f32 %v872, %v941
        %943 = vmatpush.xpose.msra.mxu0 %v942
        %v944 = vand.u32 %v869, 4294901760
        %v945 = vsub.f32 %v869, %v944
        %946 = vmatmul.f32.gmra.mxu0 %v945
        %v947 = vpop.f32.mrf.mxu0
        %v948 = vadd.f32 %v924, %v947
        %949 = vdwg.mxu0
        %950 = vmatpush.xpose.msra.mxu0 0.0
        %951 = vmatpush.xpose.msra.mxu0 0.0
        %952 = vmatpush.xpose.msra.mxu0 0.0
        %953 = vmatpush.xpose.msra.mxu0 0.0
        %954 = vmatpush.xpose.msra.mxu0 0.0
        %955 = vmatpush.xpose.msra.mxu0 0.0
        %956 = vmatpush.xpose.msra.mxu0 0.0
        %957 = vmatpush.xpose.msra.mxu0 0.0
        %958 = vmatpush.xpose.msra.mxu0 0.0
        %959 = vmatpush.xpose.msra.mxu0 0.0
        %960 = vmatpush.xpose.msra.mxu0 0.0
        %961 = vmatpush.xpose.msra.mxu0 0.0
        %962 = vmatpush.xpose.msra.mxu0 0.0
        %963 = vmatpush.xpose.msra.mxu0 0.0
        %964 = vmatpush.xpose.msra.mxu0 0.0
        %v965 = vand.u32 %v872, 4294901760
        %966 = vmatpush.xpose.msra.mxu0 %v965
        %v967 = vand.u32 %v869, 4294901760
        %v968 = vsub.f32 %v869, %v967
        %v969 = vand.u32 %v968, 4294901760
        %970 = vmatmul.f32.gmra.mxu0 %v969
        %v971 = vpop.f32.mrf.mxu0
        %v972 = vadd.f32 %v948, %v971
        %973 = vdwg.mxu0
        %974 = vmatpush.xpose.msra.mxu0 0.0
        %975 = vmatpush.xpose.msra.mxu0 0.0
        %976 = vmatpush.xpose.msra.mxu0 0.0
        %977 = vmatpush.xpose.msra.mxu0 0.0
        %978 = vmatpush.xpose.msra.mxu0 0.0
        %979 = vmatpush.xpose.msra.mxu0 0.0
        %980 = vmatpush.xpose.msra.mxu0 0.0
        %981 = vmatpush.xpose.msra.mxu0 0.0
        %982 = vmatpush.xpose.msra.mxu0 0.0
        %983 = vmatpush.xpose.msra.mxu0 0.0
        %984 = vmatpush.xpose.msra.mxu0 0.0
        %985 = vmatpush.xpose.msra.mxu0 0.0
        %986 = vmatpush.xpose.msra.mxu0 0.0
        %987 = vmatpush.xpose.msra.mxu0 0.0
        %988 = vmatpush.xpose.msra.mxu0 0.0
        %v989 = vand.u32 %v872, 4294901760
        %v990 = vsub.f32 %v872, %v989
        %v991 = vand.u32 %v990, 4294901760
        %992 = vmatpush.xpose.msra.mxu0 %v991
        %v993 = vand.u32 %v869, 4294901760
        %994 = vmatmul.f32.gmra.mxu0 %v993
        %v995 = vpop.f32.mrf.mxu0
        %v996 = vadd.f32 %v972, %v995
        %997 = vdwg.mxu0
        %998 = vmatpush.xpose.msra.mxu0 0.0
        %999 = vmatpush.xpose.msra.mxu0 0.0
        %1000 = vmatpush.xpose.msra.mxu0 0.0
        %1001 = vmatpush.xpose.msra.mxu0 0.0
        %1002 = vmatpush.xpose.msra.mxu0 0.0
        %1003 = vmatpush.xpose.msra.mxu0 0.0
        %1004 = vmatpush.xpose.msra.mxu0 0.0
        %1005 = vmatpush.xpose.msra.mxu0 0.0
        %1006 = vmatpush.xpose.msra.mxu0 0.0
        %1007 = vmatpush.xpose.msra.mxu0 0.0
        %1008 = vmatpush.xpose.msra.mxu0 0.0
        %1009 = vmatpush.xpose.msra.mxu0 0.0
        %1010 = vmatpush.xpose.msra.mxu0 0.0
        %1011 = vmatpush.xpose.msra.mxu0 0.0
        %1012 = vmatpush.xpose.msra.mxu0 0.0
        %v1013 = vand.u32 %v872, 4294901760
        %1014 = vmatpush.xpose.msra.mxu0 %v1013
        %v1015 = vand.u32 %v869, 4294901760
        %1016 = vmatmul.f32.gmra.mxu0 %v1015
        %v1017 = vpop.f32.mrf.mxu0
        %v1018 = vadd.f32 %v996, %v1017
        %1019 = vdwg.mxu0
        %v1021 = vsel %vm867, %v618, 0
        %v1024 = vsel %vm867, %v740, 0
        %1026 = vmatpush.xpose.msra.mxu0 0.0
        %1027 = vmatpush.xpose.msra.mxu0 0.0
        %1028 = vmatpush.xpose.msra.mxu0 0.0
        %1029 = vmatpush.xpose.msra.mxu0 0.0
        %1030 = vmatpush.xpose.msra.mxu0 0.0
        %1031 = vmatpush.xpose.msra.mxu0 0.0
        %1032 = vmatpush.xpose.msra.mxu0 0.0
        %1033 = vmatpush.xpose.msra.mxu0 0.0
        %1034 = vmatpush.xpose.msra.mxu0 0.0
        %1035 = vmatpush.xpose.msra.mxu0 0.0
        %1036 = vmatpush.xpose.msra.mxu0 0.0
        %1037 = vmatpush.xpose.msra.mxu0 0.0
        %1038 = vmatpush.xpose.msra.mxu0 0.0
        %1039 = vmatpush.xpose.msra.mxu0 0.0
        %1040 = vmatpush.xpose.msra.mxu0 0.0
        %v1041 = vand.u32 %v1024, 4294901760
        %1042 = vmatpush.xpose.msra.mxu0 %v1041
        %v1043 = vand.u32 %v1021, 4294901760
        %v1044 = vsub.f32 %v1021, %v1043
        %v1045 = vand.u32 %v1044, 4294901760
        %v1046 = vsub.f32 %v1044, %v1045
        %v1047 = vand.u32 %v1046, 4294901760
        %1048 = vmatmul.f32.gmra.mxu0 %v1047
        %v1049 = vpop.f32.mrf.mxu0
        %v1050 = vadd.f32 0.0, %v1049
        %1051 = vdwg.mxu0
        %1052 = vmatpush.xpose.msra.mxu0 0.0
        %1053 = vmatpush.xpose.msra.mxu0 0.0
        %1054 = vmatpush.xpose.msra.mxu0 0.0
        %1055 = vmatpush.xpose.msra.mxu0 0.0
        %1056 = vmatpush.xpose.msra.mxu0 0.0
        %1057 = vmatpush.xpose.msra.mxu0 0.0
        %1058 = vmatpush.xpose.msra.mxu0 0.0
        %1059 = vmatpush.xpose.msra.mxu0 0.0
        %1060 = vmatpush.xpose.msra.mxu0 0.0
        %1061 = vmatpush.xpose.msra.mxu0 0.0
        %1062 = vmatpush.xpose.msra.mxu0 0.0
        %1063 = vmatpush.xpose.msra.mxu0 0.0
        %1064 = vmatpush.xpose.msra.mxu0 0.0
        %1065 = vmatpush.xpose.msra.mxu0 0.0
        %1066 = vmatpush.xpose.msra.mxu0 0.0
        %v1067 = vand.u32 %v1024, 4294901760
        %v1068 = vsub.f32 %v1024, %v1067
        %v1069 = vand.u32 %v1068, 4294901760
        %v1070 = vsub.f32 %v1068, %v1069
        %v1071 = vand.u32 %v1070, 4294901760
        %1072 = vmatpush.xpose.msra.mxu0 %v1071
        %v1073 = vand.u32 %v1021, 4294901760
        %1074 = vmatmul.f32.gmra.mxu0 %v1073
        %v1075 = vpop.f32.mrf.mxu0
        %v1076 = vadd.f32 %v1050, %v1075
        %1077 = vdwg.mxu0
        %1078 = vmatpush.xpose.msra.mxu0 0.0
        %1079 = vmatpush.xpose.msra.mxu0 0.0
        %1080 = vmatpush.xpose.msra.mxu0 0.0
        %1081 = vmatpush.xpose.msra.mxu0 0.0
        %1082 = vmatpush.xpose.msra.mxu0 0.0
        %1083 = vmatpush.xpose.msra.mxu0 0.0
        %1084 = vmatpush.xpose.msra.mxu0 0.0
        %1085 = vmatpush.xpose.msra.mxu0 0.0
        %1086 = vmatpush.xpose.msra.mxu0 0.0
        %1087 = vmatpush.xpose.msra.mxu0 0.0
        %1088 = vmatpush.xpose.msra.mxu0 0.0
        %1089 = vmatpush.xpose.msra.mxu0 0.0
        %1090 = vmatpush.xpose.msra.mxu0 0.0
        %1091 = vmatpush.xpose.msra.mxu0 0.0
        %1092 = vmatpush.xpose.msra.mxu0 0.0
        %v1093 = vand.u32 %v1024, 4294901760
        %v1094 = vsub.f32 %v1024, %v1093
        %1095 = vmatpush.xpose.msra.mxu0 %v1094
        %v1096 = vand.u32 %v1021, 4294901760
        %v1097 = vsub.f32 %v1021, %v1096
        %1098 = vmatmul.f32.gmra.mxu0 %v1097
        %v1099 = vpop.f32.mrf.mxu0
        %v1100 = vadd.f32 %v1076, %v1099
        %1101 = vdwg.mxu0
        %1102 = vmatpush.xpose.msra.mxu0 0.0
        %1103 = vmatpush.xpose.msra.mxu0 0.0
        %1104 = vmatpush.xpose.msra.mxu0 0.0
        %1105 = vmatpush.xpose.msra.mxu0 0.0
        %1106 = vmatpush.xpose.msra.mxu0 0.0
        %1107 = vmatpush.xpose.msra.mxu0 0.0
        %1108 = vmatpush.xpose.msra.mxu0 0.0
        %1109 = vmatpush.xpose.msra.mxu0 0.0
        %1110 = vmatpush.xpose.msra.mxu0 0.0
        %1111 = vmatpush.xpose.msra.mxu0 0.0
        %1112 = vmatpush.xpose.msra.mxu0 0.0
        %1113 = vmatpush.xpose.msra.mxu0 0.0
        %1114 = vmatpush.xpose.msra.mxu0 0.0
        %1115 = vmatpush.xpose.msra.mxu0 0.0
        %1116 = vmatpush.xpose.msra.mxu0 0.0
        %v1117 = vand.u32 %v1024, 4294901760
        %1118 = vmatpush.xpose.msra.mxu0 %v1117
        %v1119 = vand.u32 %v1021, 4294901760
        %v1120 = vsub.f32 %v1021, %v1119
        %v1121 = vand.u32 %v1120, 4294901760
        %1122 = vmatmul.f32.gmra.mxu0 %v1121
        %v1123 = vpop.f32.mrf.mxu0
        %v1124 = vadd.f32 %v1100, %v1123
        %1125 = vdwg.mxu0
        %1126 = vmatpush.xpose.msra.mxu0 0.0
        %1127 = vmatpush.xpose.msra.mxu0 0.0
        %1128 = vmatpush.xpose.msra.mxu0 0.0
        %1129 = vmatpush.xpose.msra.mxu0 0.0
        %1130 = vmatpush.xpose.msra.mxu0 0.0
        %1131 = vmatpush.xpose.msra.mxu0 0.0
        %1132 = vmatpush.xpose.msra.mxu0 0.0
        %1133 = vmatpush.xpose.msra.mxu0 0.0
        %1134 = vmatpush.xpose.msra.mxu0 0.0
        %1135 = vmatpush.xpose.msra.mxu0 0.0
        %1136 = vmatpush.xpose.msra.mxu0 0.0
        %1137 = vmatpush.xpose.msra.mxu0 0.0
        %1138 = vmatpush.xpose.msra.mxu0 0.0
        %1139 = vmatpush.xpose.msra.mxu0 0.0
        %1140 = vmatpush.xpose.msra.mxu0 0.0
        %v1141 = vand.u32 %v1024, 4294901760
        %v1142 = vsub.f32 %v1024, %v1141
        %v1143 = vand.u32 %v1142, 4294901760
        %1144 = vmatpush.xpose.msra.mxu0 %v1143
        %v1145 = vand.u32 %v1021, 4294901760
        %1146 = vmatmul.f32.gmra.mxu0 %v1145
        %v1147 = vpop.f32.mrf.mxu0
        %v1148 = vadd.f32 %v1124, %v1147
        %1149 = vdwg.mxu0
        %1150 = vmatpush.xpose.msra.mxu0 0.0
        %1151 = vmatpush.xpose.msra.mxu0 0.0
        %1152 = vmatpush.xpose.msra.mxu0 0.0
        %1153 = vmatpush.xpose.msra.mxu0 0.0
        %1154 = vmatpush.xpose.msra.mxu0 0.0
        %1155 = vmatpush.xpose.msra.mxu0 0.0
        %1156 = vmatpush.xpose.msra.mxu0 0.0
        %1157 = vmatpush.xpose.msra.mxu0 0.0
        %1158 = vmatpush.xpose.msra.mxu0 0.0
        %1159 = vmatpush.xpose.msra.mxu0 0.0
        %1160 = vmatpush.xpose.msra.mxu0 0.0
        %1161 = vmatpush.xpose.msra.mxu0 0.0
        %1162 = vmatpush.xpose.msra.mxu0 0.0
        %1163 = vmatpush.xpose.msra.mxu0 0.0
        %1164 = vmatpush.xpose.msra.mxu0 0.0
        %v1165 = vand.u32 %v1024, 4294901760
        %1166 = vmatpush.xpose.msra.mxu0 %v1165
        %v1167 = vand.u32 %v1021, 4294901760
        %1168 = vmatmul.f32.gmra.mxu0 %v1167
        %v1169 = vpop.f32.mrf.mxu0
        %v1170 = vadd.f32 %v1148, %v1169
        %1171 = vdwg.mxu0
        %v1173 = vsel %vm867, %v620, 0
        %v1176 = vsel %vm867, %v742, 0
        %1178 = vmatpush.xpose.msra.mxu0 0.0
        %1179 = vmatpush.xpose.msra.mxu0 0.0
        %1180 = vmatpush.xpose.msra.mxu0 0.0
        %1181 = vmatpush.xpose.msra.mxu0 0.0
        %1182 = vmatpush.xpose.msra.mxu0 0.0
        %1183 = vmatpush.xpose.msra.mxu0 0.0
        %1184 = vmatpush.xpose.msra.mxu0 0.0
        %1185 = vmatpush.xpose.msra.mxu0 0.0
        %1186 = vmatpush.xpose.msra.mxu0 0.0
        %1187 = vmatpush.xpose.msra.mxu0 0.0
        %1188 = vmatpush.xpose.msra.mxu0 0.0
        %1189 = vmatpush.xpose.msra.mxu0 0.0
        %1190 = vmatpush.xpose.msra.mxu0 0.0
        %1191 = vmatpush.xpose.msra.mxu0 0.0
        %1192 = vmatpush.xpose.msra.mxu0 0.0
        %v1193 = vand.u32 %v1176, 4294901760
        %1194 = vmatpush.xpose.msra.mxu0 %v1193
        %v1195 = vand.u32 %v1173, 4294901760
        %v1196 = vsub.f32 %v1173, %v1195
        %v1197 = vand.u32 %v1196, 4294901760
        %v1198 = vsub.f32 %v1196, %v1197
        %v1199 = vand.u32 %v1198, 4294901760
        %1200 = vmatmul.f32.gmra.mxu0 %v1199
        %v1201 = vpop.f32.mrf.mxu0
        %v1202 = vadd.f32 0.0, %v1201
        %1203 = vdwg.mxu0
        %1204 = vmatpush.xpose.msra.mxu0 0.0
        %1205 = vmatpush.xpose.msra.mxu0 0.0
        %1206 = vmatpush.xpose.msra.mxu0 0.0
        %1207 = vmatpush.xpose.msra.mxu0 0.0
        %1208 = vmatpush.xpose.msra.mxu0 0.0
        %1209 = vmatpush.xpose.msra.mxu0 0.0
        %1210 = vmatpush.xpose.msra.mxu0 0.0
        %1211 = vmatpush.xpose.msra.mxu0 0.0
        %1212 = vmatpush.xpose.msra.mxu0 0.0
        %1213 = vmatpush.xpose.msra.mxu0 0.0
        %1214 = vmatpush.xpose.msra.mxu0 0.0
        %1215 = vmatpush.xpose.msra.mxu0 0.0
        %1216 = vmatpush.xpose.msra.mxu0 0.0
        %1217 = vmatpush.xpose.msra.mxu0 0.0
        %1218 = vmatpush.xpose.msra.mxu0 0.0
        %v1219 = vand.u32 %v1176, 4294901760
        %v1220 = vsub.f32 %v1176, %v1219
        %v1221 = vand.u32 %v1220, 4294901760
        %v1222 = vsub.f32 %v1220, %v1221
        %v1223 = vand.u32 %v1222, 4294901760
        %1224 = vmatpush.xpose.msra.mxu0 %v1223
        %v1225 = vand.u32 %v1173, 4294901760
        %1226 = vmatmul.f32.gmra.mxu0 %v1225
        %v1227 = vpop.f32.mrf.mxu0
        %v1228 = vadd.f32 %v1202, %v1227
        %1229 = vdwg.mxu0
        %1230 = vmatpush.xpose.msra.mxu0 0.0
        %1231 = vmatpush.xpose.msra.mxu0 0.0
        %1232 = vmatpush.xpose.msra.mxu0 0.0
        %1233 = vmatpush.xpose.msra.mxu0 0.0
        %1234 = vmatpush.xpose.msra.mxu0 0.0
        %1235 = vmatpush.xpose.msra.mxu0 0.0
        %1236 = vmatpush.xpose.msra.mxu0 0.0
        %1237 = vmatpush.xpose.msra.mxu0 0.0
        %1238 = vmatpush.xpose.msra.mxu0 0.0
        %1239 = vmatpush.xpose.msra.mxu0 0.0
        %1240 = vmatpush.xpose.msra.mxu0 0.0
        %1241 = vmatpush.xpose.msra.mxu0 0.0
        %1242 = vmatpush.xpose.msra.mxu0 0.0
        %1243 = vmatpush.xpose.msra.mxu0 0.0
        %1244 = vmatpush.xpose.msra.mxu0 0.0
        %v1245 = vand.u32 %v1176, 4294901760
        %v1246 = vsub.f32 %v1176, %v1245
        %1247 = vmatpush.xpose.msra.mxu0 %v1246
        %v1248 = vand.u32 %v1173, 4294901760
        %v1249 = vsub.f32 %v1173, %v1248
        %1250 = vmatmul.f32.gmra.mxu0 %v1249
        %v1251 = vpop.f32.mrf.mxu0
        %v1252 = vadd.f32 %v1228, %v1251
        %1253 = vdwg.mxu0
        %1254 = vmatpush.xpose.msra.mxu0 0.0
        %1255 = vmatpush.xpose.msra.mxu0 0.0
        %1256 = vmatpush.xpose.msra.mxu0 0.0
        %1257 = vmatpush.xpose.msra.mxu0 0.0
        %1258 = vmatpush.xpose.msra.mxu0 0.0
        %1259 = vmatpush.xpose.msra.mxu0 0.0
        %1260 = vmatpush.xpose.msra.mxu0 0.0
        %1261 = vmatpush.xpose.msra.mxu0 0.0
        %1262 = vmatpush.xpose.msra.mxu0 0.0
        %1263 = vmatpush.xpose.msra.mxu0 0.0
        %1264 = vmatpush.xpose.msra.mxu0 0.0
        %1265 = vmatpush.xpose.msra.mxu0 0.0
        %1266 = vmatpush.xpose.msra.mxu0 0.0
        %1267 = vmatpush.xpose.msra.mxu0 0.0
        %1268 = vmatpush.xpose.msra.mxu0 0.0
        %v1269 = vand.u32 %v1176, 4294901760
        %1270 = vmatpush.xpose.msra.mxu0 %v1269
        %v1271 = vand.u32 %v1173, 4294901760
        %v1272 = vsub.f32 %v1173, %v1271
        %v1273 = vand.u32 %v1272, 4294901760
        %1274 = vmatmul.f32.gmra.mxu0 %v1273
        %v1275 = vpop.f32.mrf.mxu0
        %v1276 = vadd.f32 %v1252, %v1275
        %1277 = vdwg.mxu0
        %1278 = vmatpush.xpose.msra.mxu0 0.0
        %1279 = vmatpush.xpose.msra.mxu0 0.0
        %1280 = vmatpush.xpose.msra.mxu0 0.0
        %1281 = vmatpush.xpose.msra.mxu0 0.0
        %1282 = vmatpush.xpose.msra.mxu0 0.0
        %1283 = vmatpush.xpose.msra.mxu0 0.0
        %1284 = vmatpush.xpose.msra.mxu0 0.0
        %1285 = vmatpush.xpose.msra.mxu0 0.0
        %1286 = vmatpush.xpose.msra.mxu0 0.0
        %1287 = vmatpush.xpose.msra.mxu0 0.0
        %1288 = vmatpush.xpose.msra.mxu0 0.0
        %1289 = vmatpush.xpose.msra.mxu0 0.0
        %1290 = vmatpush.xpose.msra.mxu0 0.0
        %1291 = vmatpush.xpose.msra.mxu0 0.0
        %1292 = vmatpush.xpose.msra.mxu0 0.0
        %v1293 = vand.u32 %v1176, 4294901760
        %v1294 = vsub.f32 %v1176, %v1293
        %v1295 = vand.u32 %v1294, 4294901760
        %1296 = vmatpush.xpose.msra.mxu0 %v1295
        %v1297 = vand.u32 %v1173, 4294901760
        %1298 = vmatmul.f32.gmra.mxu0 %v1297
        %v1299 = vpop.f32.mrf.mxu0
        %v1300 = vadd.f32 %v1276, %v1299
        %1301 = vdwg.mxu0
        %1302 = vmatpush.xpose.msra.mxu0 0.0
        %1303 = vmatpush.xpose.msra.mxu0 0.0
        %1304 = vmatpush.xpose.msra.mxu0 0.0
        %1305 = vmatpush.xpose.msra.mxu0 0.0
        %1306 = vmatpush.xpose.msra.mxu0 0.0
        %1307 = vmatpush.xpose.msra.mxu0 0.0
        %1308 = vmatpush.xpose.msra.mxu0 0.0
        %1309 = vmatpush.xpose.msra.mxu0 0.0
        %1310 = vmatpush.xpose.msra.mxu0 0.0
        %1311 = vmatpush.xpose.msra.mxu0 0.0
        %1312 = vmatpush.xpose.msra.mxu0 0.0
        %1313 = vmatpush.xpose.msra.mxu0 0.0
        %1314 = vmatpush.xpose.msra.mxu0 0.0
        %1315 = vmatpush.xpose.msra.mxu0 0.0
        %1316 = vmatpush.xpose.msra.mxu0 0.0
        %v1317 = vand.u32 %v1176, 4294901760
        %1318 = vmatpush.xpose.msra.mxu0 %v1317
        %v1319 = vand.u32 %v1173, 4294901760
        %1320 = vmatmul.f32.gmra.mxu0 %v1319
        %v1321 = vpop.f32.mrf.mxu0
        %v1322 = vadd.f32 %v1300, %v1321
        %1323 = vdwg.mxu0
        %v1325 = vsel %vm867, %v622, 0
        %v1328 = vsel %vm867, %v744, 0
        %1330 = vmatpush.xpose.msra.mxu0 0.0
        %1331 = vmatpush.xpose.msra.mxu0 0.0
        %1332 = vmatpush.xpose.msra.mxu0 0.0
        %1333 = vmatpush.xpose.msra.mxu0 0.0
        %1334 = vmatpush.xpose.msra.mxu0 0.0
        %1335 = vmatpush.xpose.msra.mxu0 0.0
        %1336 = vmatpush.xpose.msra.mxu0 0.0
        %1337 = vmatpush.xpose.msra.mxu0 0.0
        %1338 = vmatpush.xpose.msra.mxu0 0.0
        %1339 = vmatpush.xpose.msra.mxu0 0.0
        %1340 = vmatpush.xpose.msra.mxu0 0.0
        %1341 = vmatpush.xpose.msra.mxu0 0.0
        %1342 = vmatpush.xpose.msra.mxu0 0.0
        %1343 = vmatpush.xpose.msra.mxu0 0.0
        %1344 = vmatpush.xpose.msra.mxu0 0.0
        %v1345 = vand.u32 %v1328, 4294901760
        %1346 = vmatpush.xpose.msra.mxu0 %v1345
        %v1347 = vand.u32 %v1325, 4294901760
        %v1348 = vsub.f32 %v1325, %v1347
        %v1349 = vand.u32 %v1348, 4294901760
        %v1350 = vsub.f32 %v1348, %v1349
        %v1351 = vand.u32 %v1350, 4294901760
        %1352 = vmatmul.f32.gmra.mxu0 %v1351
        %v1353 = vpop.f32.mrf.mxu0
        %v1354 = vadd.f32 0.0, %v1353
        %1355 = vdwg.mxu0
        %1356 = vmatpush.xpose.msra.mxu0 0.0
        %1357 = vmatpush.xpose.msra.mxu0 0.0
        %1358 = vmatpush.xpose.msra.mxu0 0.0
        %1359 = vmatpush.xpose.msra.mxu0 0.0
        %1360 = vmatpush.xpose.msra.mxu0 0.0
        %1361 = vmatpush.xpose.msra.mxu0 0.0
        %1362 = vmatpush.xpose.msra.mxu0 0.0
        %1363 = vmatpush.xpose.msra.mxu0 0.0
        %1364 = vmatpush.xpose.msra.mxu0 0.0
        %1365 = vmatpush.xpose.msra.mxu0 0.0
        %1366 = vmatpush.xpose.msra.mxu0 0.0
        %1367 = vmatpush.xpose.msra.mxu0 0.0
        %1368 = vmatpush.xpose.msra.mxu0 0.0
        %1369 = vmatpush.xpose.msra.mxu0 0.0
        %1370 = vmatpush.xpose.msra.mxu0 0.0
        %v1371 = vand.u32 %v1328, 4294901760
        %v1372 = vsub.f32 %v1328, %v1371
        %v1373 = vand.u32 %v1372, 4294901760
        %v1374 = vsub.f32 %v1372, %v1373
        %v1375 = vand.u32 %v1374, 4294901760
        %1376 = vmatpush.xpose.msra.mxu0 %v1375
        %v1377 = vand.u32 %v1325, 4294901760
        %1378 = vmatmul.f32.gmra.mxu0 %v1377
        %v1379 = vpop.f32.mrf.mxu0
        %v1380 = vadd.f32 %v1354, %v1379
        %1381 = vdwg.mxu0
        %1382 = vmatpush.xpose.msra.mxu0 0.0
        %1383 = vmatpush.xpose.msra.mxu0 0.0
        %1384 = vmatpush.xpose.msra.mxu0 0.0
        %1385 = vmatpush.xpose.msra.mxu0 0.0
        %1386 = vmatpush.xpose.msra.mxu0 0.0
        %1387 = vmatpush.xpose.msra.mxu0 0.0
        %1388 = vmatpush.xpose.msra.mxu0 0.0
        %1389 = vmatpush.xpose.msra.mxu0 0.0
        %1390 = vmatpush.xpose.msra.mxu0 0.0
        %1391 = vmatpush.xpose.msra.mxu0 0.0
        %1392 = vmatpush.xpose.msra.mxu0 0.0
        %1393 = vmatpush.xpose.msra.mxu0 0.0
        %1394 = vmatpush.xpose.msra.mxu0 0.0
        %1395 = vmatpush.xpose.msra.mxu0 0.0
        %1396 = vmatpush.xpose.msra.mxu0 0.0
        %v1397 = vand.u32 %v1328, 4294901760
        %v1398 = vsub.f32 %v1328, %v1397
        %1399 = vmatpush.xpose.msra.mxu0 %v1398
        %v1400 = vand.u32 %v1325, 4294901760
        %v1401 = vsub.f32 %v1325, %v1400
        %1402 = vmatmul.f32.gmra.mxu0 %v1401
        %v1403 = vpop.f32.mrf.mxu0
        %v1404 = vadd.f32 %v1380, %v1403
        %1405 = vdwg.mxu0
        %1406 = vmatpush.xpose.msra.mxu0 0.0
        %1407 = vmatpush.xpose.msra.mxu0 0.0
        %1408 = vmatpush.xpose.msra.mxu0 0.0
        %1409 = vmatpush.xpose.msra.mxu0 0.0
        %1410 = vmatpush.xpose.msra.mxu0 0.0
        %1411 = vmatpush.xpose.msra.mxu0 0.0
        %1412 = vmatpush.xpose.msra.mxu0 0.0
        %1413 = vmatpush.xpose.msra.mxu0 0.0
        %1414 = vmatpush.xpose.msra.mxu0 0.0
        %1415 = vmatpush.xpose.msra.mxu0 0.0
        %1416 = vmatpush.xpose.msra.mxu0 0.0
        %1417 = vmatpush.xpose.msra.mxu0 0.0
        %1418 = vmatpush.xpose.msra.mxu0 0.0
        %1419 = vmatpush.xpose.msra.mxu0 0.0
        %1420 = vmatpush.xpose.msra.mxu0 0.0
        %v1421 = vand.u32 %v1328, 4294901760
        %1422 = vmatpush.xpose.msra.mxu0 %v1421
        %v1423 = vand.u32 %v1325, 4294901760
        %v1424 = vsub.f32 %v1325, %v1423
        %v1425 = vand.u32 %v1424, 4294901760
        %1426 = vmatmul.f32.gmra.mxu0 %v1425
        %v1427 = vpop.f32.mrf.mxu0
        %v1428 = vadd.f32 %v1404, %v1427
        %1429 = vdwg.mxu0
        %1430 = vmatpush.xpose.msra.mxu0 0.0
        %1431 = vmatpush.xpose.msra.mxu0 0.0
        %1432 = vmatpush.xpose.msra.mxu0 0.0
        %1433 = vmatpush.xpose.msra.mxu0 0.0
        %1434 = vmatpush.xpose.msra.mxu0 0.0
        %1435 = vmatpush.xpose.msra.mxu0 0.0
        %1436 = vmatpush.xpose.msra.mxu0 0.0
        %1437 = vmatpush.xpose.msra.mxu0 0.0
        %1438 = vmatpush.xpose.msra.mxu0 0.0
        %1439 = vmatpush.xpose.msra.mxu0 0.0
        %1440 = vmatpush.xpose.msra.mxu0 0.0
        %1441 = vmatpush.xpose.msra.mxu0 0.0
        %1442 = vmatpush.xpose.msra.mxu0 0.0
        %1443 = vmatpush.xpose.msra.mxu0 0.0
        %1444 = vmatpush.xpose.msra.mxu0 0.0
        %v1445 = vand.u32 %v1328, 4294901760
        %v1446 = vsub.f32 %v1328, %v1445
        %v1447 = vand.u32 %v1446, 4294901760
        %1448 = vmatpush.xpose.msra.mxu0 %v1447
        %v1449 = vand.u32 %v1325, 4294901760
        %1450 = vmatmul.f32.gmra.mxu0 %v1449
        %v1451 = vpop.f32.mrf.mxu0
        %v1452 = vadd.f32 %v1428, %v1451
        %1453 = vdwg.mxu0
        %1454 = vmatpush.xpose.msra.mxu0 0.0
        %1455 = vmatpush.xpose.msra.mxu0 0.0
        %1456 = vmatpush.xpose.msra.mxu0 0.0
        %1457 = vmatpush.xpose.msra.mxu0 0.0
        %1458 = vmatpush.xpose.msra.mxu0 0.0
        %1459 = vmatpush.xpose.msra.mxu0 0.0
        %1460 = vmatpush.xpose.msra.mxu0 0.0
        %1461 = vmatpush.xpose.msra.mxu0 0.0
        %1462 = vmatpush.xpose.msra.mxu0 0.0
        %1463 = vmatpush.xpose.msra.mxu0 0.0
        %1464 = vmatpush.xpose.msra.mxu0 0.0
        %1465 = vmatpush.xpose.msra.mxu0 0.0
        %1466 = vmatpush.xpose.msra.mxu0 0.0
        %1467 = vmatpush.xpose.msra.mxu0 0.0
        %1468 = vmatpush.xpose.msra.mxu0 0.0
        %v1469 = vand.u32 %v1328, 4294901760
        %1470 = vmatpush.xpose.msra.mxu0 %v1469
        %v1471 = vand.u32 %v1325, 4294901760
        %1472 = vmatmul.f32.gmra.mxu0 %v1471
        %v1473 = vpop.f32.mrf.mxu0
        %v1474 = vadd.f32 %v1452, %v1473
        %1475 = vdwg.mxu0
        %v1476 = vsel %vm867, %v1018, -inf
        %1477 = vmax.xlane.f32.xlu0 %v1476
        %v1478 = vpop.xlane.xlu0 %1477
        %v1479 = vsel %vm867, %v1170, -inf
        %1480 = vmax.xlane.f32.xlu0 %v1479
        %v1481 = vpop.xlane.xlu0 %1480
        %v1482 = vsel %vm867, %v1322, -inf
        %1483 = vmax.xlane.f32.xlu0 %v1482
        %v1484 = vpop.xlane.xlu0 %1483
        %v1485 = vsel %vm867, %v1474, -inf
        %1486 = vmax.xlane.f32.xlu0 %v1485
        %v1487 = vpop.xlane.xlu0 %1486
        %v1488 = vsub.f32 %v1018, %v1478
        %v1489 = vsub.f32 %v1170, %v1481
        %v1490 = vsub.f32 %v1322, %v1484
        %v1491 = vsub.f32 %v1474, %v1487
        %v1492 = vmul.f32 %v1488, 1.442695
        %v1493 = vpow.pop %v1492
        %v1494 = vmul.f32 %v1489, 1.442695
        %v1495 = vpow.pop %v1494
        %v1496 = vmul.f32 %v1490, 1.442695
        %v1497 = vpow.pop %v1496
        %v1498 = vmul.f32 %v1491, 1.442695
        %v1499 = vpow.pop %v1498
        %v1500 = vsel %vm867, %v1493, 0.0
        %1501 = vadd.xlane.f32.xlu0 %v1500
        %v1502 = vpop.xlane.xlu0 %1501
        %v1503 = vsel %vm867, %v1495, 0.0
        %1504 = vadd.xlane.f32.xlu0 %v1503
        %v1505 = vpop.xlane.xlu0 %1504
        %v1506 = vsel %vm867, %v1497, 0.0
        %1507 = vadd.xlane.f32.xlu0 %v1506
        %v1508 = vpop.xlane.xlu0 %1507
        %v1509 = vsel %vm867, %v1499, 0.0
        %1510 = vadd.xlane.f32.xlu0 %v1509
        %v1511 = vpop.xlane.xlu0 %1510
        %v1513 = vsel %vm867, %v1493, 0
        %1515 = vmatpush.msra.mxu0 0.0
        %1516 = vmatpush.msra.mxu0 0.0
        %1517 = vmatpush.msra.mxu0 0.0
        %1518 = vmatpush.msra.mxu0 0.0
        %1519 = vmatpush.msra.mxu0 0.0
        %1520 = vmatpush.msra.mxu0 0.0
        %1521 = vmatpush.msra.mxu0 0.0
        %1522 = vmatpush.msra.mxu0 0.0
        %1523 = vmatpush.msra.mxu0 0.0
        %1524 = vmatpush.msra.mxu0 0.0
        %1525 = vmatpush.msra.mxu0 0.0
        %1526 = vmatpush.msra.mxu0 0.0
        %1527 = vmatpush.msra.mxu0 0.0
        %1528 = vmatpush.msra.mxu0 0.0
        %1529 = vmatpush.msra.mxu0 0.0
        %v1530 = vand.u32 %v860, 4294901760
        %1531 = vmatpush.msra.mxu0 %v1530
        %v1532 = vand.u32 %v1513, 4294901760
        %v1533 = vsub.f32 %v1513, %v1532
        %v1534 = vand.u32 %v1533, 4294901760
        %v1535 = vsub.f32 %v1533, %v1534
        %v1536 = vand.u32 %v1535, 4294901760
        %1537 = vmatmul.f32.gmra.mxu0 %v1536
        %v1538 = vpop.f32.mrf.mxu0
        %v1539 = vadd.f32 0.0, %v1538
        %1540 = vdwg.mxu0
        %1541 = vmatpush.msra.mxu0 0.0
        %1542 = vmatpush.msra.mxu0 0.0
        %1543 = vmatpush.msra.mxu0 0.0
        %1544 = vmatpush.msra.mxu0 0.0
        %1545 = vmatpush.msra.mxu0 0.0
        %1546 = vmatpush.msra.mxu0 0.0
        %1547 = vmatpush.msra.mxu0 0.0
        %1548 = vmatpush.msra.mxu0 0.0
        %1549 = vmatpush.msra.mxu0 0.0
        %1550 = vmatpush.msra.mxu0 0.0
        %1551 = vmatpush.msra.mxu0 0.0
        %1552 = vmatpush.msra.mxu0 0.0
        %1553 = vmatpush.msra.mxu0 0.0
        %1554 = vmatpush.msra.mxu0 0.0
        %1555 = vmatpush.msra.mxu0 0.0
        %v1556 = vand.u32 %v860, 4294901760
        %v1557 = vsub.f32 %v860, %v1556
        %v1558 = vand.u32 %v1557, 4294901760
        %v1559 = vsub.f32 %v1557, %v1558
        %v1560 = vand.u32 %v1559, 4294901760
        %1561 = vmatpush.msra.mxu0 %v1560
        %v1562 = vand.u32 %v1513, 4294901760
        %1563 = vmatmul.f32.gmra.mxu0 %v1562
        %v1564 = vpop.f32.mrf.mxu0
        %v1565 = vadd.f32 %v1539, %v1564
        %1566 = vdwg.mxu0
        %1567 = vmatpush.msra.mxu0 0.0
        %1568 = vmatpush.msra.mxu0 0.0
        %1569 = vmatpush.msra.mxu0 0.0
        %1570 = vmatpush.msra.mxu0 0.0
        %1571 = vmatpush.msra.mxu0 0.0
        %1572 = vmatpush.msra.mxu0 0.0
        %1573 = vmatpush.msra.mxu0 0.0
        %1574 = vmatpush.msra.mxu0 0.0
        %1575 = vmatpush.msra.mxu0 0.0
        %1576 = vmatpush.msra.mxu0 0.0
        %1577 = vmatpush.msra.mxu0 0.0
        %1578 = vmatpush.msra.mxu0 0.0
        %1579 = vmatpush.msra.mxu0 0.0
        %1580 = vmatpush.msra.mxu0 0.0
        %1581 = vmatpush.msra.mxu0 0.0
        %v1582 = vand.u32 %v860, 4294901760
        %v1583 = vsub.f32 %v860, %v1582
        %1584 = vmatpush.msra.mxu0 %v1583
        %v1585 = vand.u32 %v1513, 4294901760
        %v1586 = vsub.f32 %v1513, %v1585
        %1587 = vmatmul.f32.gmra.mxu0 %v1586
        %v1588 = vpop.f32.mrf.mxu0
        %v1589 = vadd.f32 %v1565, %v1588
        %1590 = vdwg.mxu0
        %1591 = vmatpush.msra.mxu0 0.0
        %1592 = vmatpush.msra.mxu0 0.0
        %1593 = vmatpush.msra.mxu0 0.0
        %1594 = vmatpush.msra.mxu0 0.0
        %1595 = vmatpush.msra.mxu0 0.0
        %1596 = vmatpush.msra.mxu0 0.0
        %1597 = vmatpush.msra.mxu0 0.0
        %1598 = vmatpush.msra.mxu0 0.0
        %1599 = vmatpush.msra.mxu0 0.0
        %1600 = vmatpush.msra.mxu0 0.0
        %1601 = vmatpush.msra.mxu0 0.0
        %1602 = vmatpush.msra.mxu0 0.0
        %1603 = vmatpush.msra.mxu0 0.0
        %1604 = vmatpush.msra.mxu0 0.0
        %1605 = vmatpush.msra.mxu0 0.0
        %v1606 = vand.u32 %v860, 4294901760
        %1607 = vmatpush.msra.mxu0 %v1606
        %v1608 = vand.u32 %v1513, 4294901760
        %v1609 = vsub.f32 %v1513, %v1608
        %v1610 = vand.u32 %v1609, 4294901760
        %1611 = vmatmul.f32.gmra.mxu0 %v1610
        %v1612 = vpop.f32.mrf.mxu0
        %v1613 = vadd.f32 %v1589, %v1612
        %1614 = vdwg.mxu0
        %1615 = vmatpush.msra.mxu0 0.0
        %1616 = vmatpush.msra.mxu0 0.0
        %1617 = vmatpush.msra.mxu0 0.0
        %1618 = vmatpush.msra.mxu0 0.0
        %1619 = vmatpush.msra.mxu0 0.0
        %1620 = vmatpush.msra.mxu0 0.0
        %1621 = vmatpush.msra.mxu0 0.0
        %1622 = vmatpush.msra.mxu0 0.0
        %1623 = vmatpush.msra.mxu0 0.0
        %1624 = vmatpush.msra.mxu0 0.0
        %1625 = vmatpush.msra.mxu0 0.0
        %1626 = vmatpush.msra.mxu0 0.0
        %1627 = vmatpush.msra.mxu0 0.0
        %1628 = vmatpush.msra.mxu0 0.0
        %1629 = vmatpush.msra.mxu0 0.0
        %v1630 = vand.u32 %v860, 4294901760
        %v1631 = vsub.f32 %v860, %v1630
        %v1632 = vand.u32 %v1631, 4294901760
        %1633 = vmatpush.msra.mxu0 %v1632
        %v1634 = vand.u32 %v1513, 4294901760
        %1635 = vmatmul.f32.gmra.mxu0 %v1634
        %v1636 = vpop.f32.mrf.mxu0
        %v1637 = vadd.f32 %v1613, %v1636
        %1638 = vdwg.mxu0
        %1639 = vmatpush.msra.mxu0 0.0
        %1640 = vmatpush.msra.mxu0 0.0
        %1641 = vmatpush.msra.mxu0 0.0
        %1642 = vmatpush.msra.mxu0 0.0
        %1643 = vmatpush.msra.mxu0 0.0
        %1644 = vmatpush.msra.mxu0 0.0
        %1645 = vmatpush.msra.mxu0 0.0
        %1646 = vmatpush.msra.mxu0 0.0
        %1647 = vmatpush.msra.mxu0 0.0
        %1648 = vmatpush.msra.mxu0 0.0
        %1649 = vmatpush.msra.mxu0 0.0
        %1650 = vmatpush.msra.mxu0 0.0
        %1651 = vmatpush.msra.mxu0 0.0
        %1652 = vmatpush.msra.mxu0 0.0
        %1653 = vmatpush.msra.mxu0 0.0
        %v1654 = vand.u32 %v860, 4294901760
        %1655 = vmatpush.msra.mxu0 %v1654
        %v1656 = vand.u32 %v1513, 4294901760
        %1657 = vmatmul.f32.gmra.mxu0 %v1656
        %v1658 = vpop.f32.mrf.mxu0
        %v1659 = vadd.f32 %v1637, %v1658
        %1660 = vdwg.mxu0
        %v1662 = vsel %vm867, %v1495, 0
        %1664 = vmatpush.msra.mxu0 0.0
        %1665 = vmatpush.msra.mxu0 0.0
        %1666 = vmatpush.msra.mxu0 0.0
        %1667 = vmatpush.msra.mxu0 0.0
        %1668 = vmatpush.msra.mxu0 0.0
        %1669 = vmatpush.msra.mxu0 0.0
        %1670 = vmatpush.msra.mxu0 0.0
        %1671 = vmatpush.msra.mxu0 0.0
        %1672 = vmatpush.msra.mxu0 0.0
        %1673 = vmatpush.msra.mxu0 0.0
        %1674 = vmatpush.msra.mxu0 0.0
        %1675 = vmatpush.msra.mxu0 0.0
        %1676 = vmatpush.msra.mxu0 0.0
        %1677 = vmatpush.msra.mxu0 0.0
        %1678 = vmatpush.msra.mxu0 0.0
        %v1679 = vand.u32 %v862, 4294901760
        %1680 = vmatpush.msra.mxu0 %v1679
        %v1681 = vand.u32 %v1662, 4294901760
        %v1682 = vsub.f32 %v1662, %v1681
        %v1683 = vand.u32 %v1682, 4294901760
        %v1684 = vsub.f32 %v1682, %v1683
        %v1685 = vand.u32 %v1684, 4294901760
        %1686 = vmatmul.f32.gmra.mxu0 %v1685
        %v1687 = vpop.f32.mrf.mxu0
        %v1688 = vadd.f32 0.0, %v1687
        %1689 = vdwg.mxu0
        %1690 = vmatpush.msra.mxu0 0.0
        %1691 = vmatpush.msra.mxu0 0.0
        %1692 = vmatpush.msra.mxu0 0.0
        %1693 = vmatpush.msra.mxu0 0.0
        %1694 = vmatpush.msra.mxu0 0.0
        %1695 = vmatpush.msra.mxu0 0.0
        %1696 = vmatpush.msra.mxu0 0.0
        %1697 = vmatpush.msra.mxu0 0.0
        %1698 = vmatpush.msra.mxu0 0.0
        %1699 = vmatpush.msra.mxu0 0.0
        %1700 = vmatpush.msra.mxu0 0.0
        %1701 = vmatpush.msra.mxu0 0.0
        %1702 = vmatpush.msra.mxu0 0.0
        %1703 = vmatpush.msra.mxu0 0.0
        %1704 = vmatpush.msra.mxu0 0.0
        %v1705 = vand.u32 %v862, 4294901760
        %v1706 = vsub.f32 %v862, %v1705
        %v1707 = vand.u32 %v1706, 4294901760
        %v1708 = vsub.f32 %v1706, %v1707
        %v1709 = vand.u32 %v1708, 4294901760
        %1710 = vmatpush.msra.mxu0 %v1709
        %v1711 = vand.u32 %v1662, 4294901760
        %1712 = vmatmul.f32.gmra.mxu0 %v1711
        %v1713 = vpop.f32.mrf.mxu0
        %v1714 = vadd.f32 %v1688, %v1713
        %1715 = vdwg.mxu0
        %1716 = vmatpush.msra.mxu0 0.0
        %1717 = vmatpush.msra.mxu0 0.0
        %1718 = vmatpush.msra.mxu0 0.0
        %1719 = vmatpush.msra.mxu0 0.0
        %1720 = vmatpush.msra.mxu0 0.0
        %1721 = vmatpush.msra.mxu0 0.0
        %1722 = vmatpush.msra.mxu0 0.0
        %1723 = vmatpush.msra.mxu0 0.0
        %1724 = vmatpush.msra.mxu0 0.0
        %1725 = vmatpush.msra.mxu0 0.0
        %1726 = vmatpush.msra.mxu0 0.0
        %1727 = vmatpush.msra.mxu0 0.0
        %1728 = vmatpush.msra.mxu0 0.0
        %1729 = vmatpush.msra.mxu0 0.0
        %1730 = vmatpush.msra.mxu0 0.0
        %v1731 = vand.u32 %v862, 4294901760
        %v1732 = vsub.f32 %v862, %v1731
        %1733 = vmatpush.msra.mxu0 %v1732
        %v1734 = vand.u32 %v1662, 4294901760
        %v1735 = vsub.f32 %v1662, %v1734
        %1736 = vmatmul.f32.gmra.mxu0 %v1735
        %v1737 = vpop.f32.mrf.mxu0
        %v1738 = vadd.f32 %v1714, %v1737
        %1739 = vdwg.mxu0
        %1740 = vmatpush.msra.mxu0 0.0
        %1741 = vmatpush.msra.mxu0 0.0
        %1742 = vmatpush.msra.mxu0 0.0
        %1743 = vmatpush.msra.mxu0 0.0
        %1744 = vmatpush.msra.mxu0 0.0
        %1745 = vmatpush.msra.mxu0 0.0
        %1746 = vmatpush.msra.mxu0 0.0
        %1747 = vmatpush.msra.mxu0 0.0
        %1748 = vmatpush.msra.mxu0 0.0
        %1749 = vmatpush.msra.mxu0 0.0
        %1750 = vmatpush.msra.mxu0 0.0
        %1751 = vmatpush.msra.mxu0 0.0
        %1752 = vmatpush.msra.mxu0 0.0
        %1753 = vmatpush.msra.mxu0 0.0
        %1754 = vmatpush.msra.mxu0 0.0
        %v1755 = vand.u32 %v862, 4294901760
        %1756 = vmatpush.msra.mxu0 %v1755
        %v1757 = vand.u32 %v1662, 4294901760
        %v1758 = vsub.f32 %v1662, %v1757
        %v1759 = vand.u32 %v1758, 4294901760
        %1760 = vmatmul.f32.gmra.mxu0 %v1759
        %v1761 = vpop.f32.mrf.mxu0
        %v1762 = vadd.f32 %v1738, %v1761
        %1763 = vdwg.mxu0
        %1764 = vmatpush.msra.mxu0 0.0
        %1765 = vmatpush.msra.mxu0 0.0
        %1766 = vmatpush.msra.mxu0 0.0
        %1767 = vmatpush.msra.mxu0 0.0
        %1768 = vmatpush.msra.mxu0 0.0
        %1769 = vmatpush.msra.mxu0 0.0
        %1770 = vmatpush.msra.mxu0 0.0
        %1771 = vmatpush.msra.mxu0 0.0
        %1772 = vmatpush.msra.mxu0 0.0
        %1773 = vmatpush.msra.mxu0 0.0
        %1774 = vmatpush.msra.mxu0 0.0
        %1775 = vmatpush.msra.mxu0 0.0
        %1776 = vmatpush.msra.mxu0 0.0
        %1777 = vmatpush.msra.mxu0 0.0
        %1778 = vmatpush.msra.mxu0 0.0
        %v1779 = vand.u32 %v862, 4294901760
        %v1780 = vsub.f32 %v862, %v1779
        %v1781 = vand.u32 %v1780, 4294901760
        %1782 = vmatpush.msra.mxu0 %v1781
        %v1783 = vand.u32 %v1662, 4294901760
        %1784 = vmatmul.f32.gmra.mxu0 %v1783
        %v1785 = vpop.f32.mrf.mxu0
        %v1786 = vadd.f32 %v1762, %v1785
        %1787 = vdwg.mxu0
        %1788 = vmatpush.msra.mxu0 0.0
        %1789 = vmatpush.msra.mxu0 0.0
        %1790 = vmatpush.msra.mxu0 0.0
        %1791 = vmatpush.msra.mxu0 0.0
        %1792 = vmatpush.msra.mxu0 0.0
        %1793 = vmatpush.msra.mxu0 0.0
        %1794 = vmatpush.msra.mxu0 0.0
        %1795 = vmatpush.msra.mxu0 0.0
        %1796 = vmatpush.msra.mxu0 0.0
        %1797 = vmatpush.msra.mxu0 0.0
        %1798 = vmatpush.msra.mxu0 0.0
        %1799 = vmatpush.msra.mxu0 0.0
        %1800 = vmatpush.msra.mxu0 0.0
        %1801 = vmatpush.msra.mxu0 0.0
        %1802 = vmatpush.msra.mxu0 0.0
        %v1803 = vand.u32 %v862, 4294901760
        %1804 = vmatpush.msra.mxu0 %v1803
        %v1805 = vand.u32 %v1662, 4294901760
        %1806 = vmatmul.f32.gmra.mxu0 %v1805
        %v1807 = vpop.f32.mrf.mxu0
        %v1808 = vadd.f32 %v1786, %v1807
        %1809 = vdwg.mxu0
        %v1811 = vsel %vm867, %v1497, 0
        %1813 = vmatpush.msra.mxu0 0.0
        %1814 = vmatpush.msra.mxu0 0.0
        %1815 = vmatpush.msra.mxu0 0.0
        %1816 = vmatpush.msra.mxu0 0.0
        %1817 = vmatpush.msra.mxu0 0.0
        %1818 = vmatpush.msra.mxu0 0.0
        %1819 = vmatpush.msra.mxu0 0.0
        %1820 = vmatpush.msra.mxu0 0.0
        %1821 = vmatpush.msra.mxu0 0.0
        %1822 = vmatpush.msra.mxu0 0.0
        %1823 = vmatpush.msra.mxu0 0.0
        %1824 = vmatpush.msra.mxu0 0.0
        %1825 = vmatpush.msra.mxu0 0.0
        %1826 = vmatpush.msra.mxu0 0.0
        %1827 = vmatpush.msra.mxu0 0.0
        %v1828 = vand.u32 %v864, 4294901760
        %1829 = vmatpush.msra.mxu0 %v1828
        %v1830 = vand.u32 %v1811, 4294901760
        %v1831 = vsub.f32 %v1811, %v1830
        %v1832 = vand.u32 %v1831, 4294901760
        %v1833 = vsub.f32 %v1831, %v1832
        %v1834 = vand.u32 %v1833, 4294901760
        %1835 = vmatmul.f32.gmra.mxu0 %v1834
        %v1836 = vpop.f32.mrf.mxu0
        %v1837 = vadd.f32 0.0, %v1836
        %1838 = vdwg.mxu0
        %1839 = vmatpush.msra.mxu0 0.0
        %1840 = vmatpush.msra.mxu0 0.0
        %1841 = vmatpush.msra.mxu0 0.0
        %1842 = vmatpush.msra.mxu0 0.0
        %1843 = vmatpush.msra.mxu0 0.0
        %1844 = vmatpush.msra.mxu0 0.0
        %1845 = vmatpush.msra.mxu0 0.0
        %1846 = vmatpush.msra.mxu0 0.0
        %1847 = vmatpush.msra.mxu0 0.0
        %1848 = vmatpush.msra.mxu0 0.0
        %1849 = vmatpush.msra.mxu0 0.0
        %1850 = vmatpush.msra.mxu0 0.0
        %1851 = vmatpush.msra.mxu0 0.0
        %1852 = vmatpush.msra.mxu0 0.0
        %1853 = vmatpush.msra.mxu0 0.0
        %v1854 = vand.u32 %v864, 4294901760
        %v1855 = vsub.f32 %v864, %v1854
        %v1856 = vand.u32 %v1855, 4294901760
        %v1857 = vsub.f32 %v1855, %v1856
        %v1858 = vand.u32 %v1857, 4294901760
        %1859 = vmatpush.msra.mxu0 %v1858
        %v1860 = vand.u32 %v1811, 4294901760
        %1861 = vmatmul.f32.gmra.mxu0 %v1860
        %v1862 = vpop.f32.mrf.mxu0
        %v1863 = vadd.f32 %v1837, %v1862
        %1864 = vdwg.mxu0
        %1865 = vmatpush.msra.mxu0 0.0
        %1866 = vmatpush.msra.mxu0 0.0
        %1867 = vmatpush.msra.mxu0 0.0
        %1868 = vmatpush.msra.mxu0 0.0
        %1869 = vmatpush.msra.mxu0 0.0
        %1870 = vmatpush.msra.mxu0 0.0
        %1871 = vmatpush.msra.mxu0 0.0
        %1872 = vmatpush.msra.mxu0 0.0
        %1873 = vmatpush.msra.mxu0 0.0
        %1874 = vmatpush.msra.mxu0 0.0
        %1875 = vmatpush.msra.mxu0 0.0
        %1876 = vmatpush.msra.mxu0 0.0
        %1877 = vmatpush.msra.mxu0 0.0
        %1878 = vmatpush.msra.mxu0 0.0
        %1879 = vmatpush.msra.mxu0 0.0
        %v1880 = vand.u32 %v864, 4294901760
        %v1881 = vsub.f32 %v864, %v1880
        %1882 = vmatpush.msra.mxu0 %v1881
        %v1883 = vand.u32 %v1811, 4294901760
        %v1884 = vsub.f32 %v1811, %v1883
        %1885 = vmatmul.f32.gmra.mxu0 %v1884
        %v1886 = vpop.f32.mrf.mxu0
        %v1887 = vadd.f32 %v1863, %v1886
        %1888 = vdwg.mxu0
        %1889 = vmatpush.msra.mxu0 0.0
        %1890 = vmatpush.msra.mxu0 0.0
        %1891 = vmatpush.msra.mxu0 0.0
        %1892 = vmatpush.msra.mxu0 0.0
        %1893 = vmatpush.msra.mxu0 0.0
        %1894 = vmatpush.msra.mxu0 0.0
        %1895 = vmatpush.msra.mxu0 0.0
        %1896 = vmatpush.msra.mxu0 0.0
        %1897 = vmatpush.msra.mxu0 0.0
        %1898 = vmatpush.msra.mxu0 0.0
        %1899 = vmatpush.msra.mxu0 0.0
        %1900 = vmatpush.msra.mxu0 0.0
        %1901 = vmatpush.msra.mxu0 0.0
        %1902 = vmatpush.msra.mxu0 0.0
        %1903 = vmatpush.msra.mxu0 0.0
        %v1904 = vand.u32 %v864, 4294901760
        %1905 = vmatpush.msra.mxu0 %v1904
        %v1906 = vand.u32 %v1811, 4294901760
        %v1907 = vsub.f32 %v1811, %v1906
        %v1908 = vand.u32 %v1907, 4294901760
        %1909 = vmatmul.f32.gmra.mxu0 %v1908
        %v1910 = vpop.f32.mrf.mxu0
        %v1911 = vadd.f32 %v1887, %v1910
        %1912 = vdwg.mxu0
        %1913 = vmatpush.msra.mxu0 0.0
        %1914 = vmatpush.msra.mxu0 0.0
        %1915 = vmatpush.msra.mxu0 0.0
        %1916 = vmatpush.msra.mxu0 0.0
        %1917 = vmatpush.msra.mxu0 0.0
        %1918 = vmatpush.msra.mxu0 0.0
        %1919 = vmatpush.msra.mxu0 0.0
        %1920 = vmatpush.msra.mxu0 0.0
        %1921 = vmatpush.msra.mxu0 0.0
        %1922 = vmatpush.msra.mxu0 0.0
        %1923 = vmatpush.msra.mxu0 0.0
        %1924 = vmatpush.msra.mxu0 0.0
        %1925 = vmatpush.msra.mxu0 0.0
        %1926 = vmatpush.msra.mxu0 0.0
        %1927 = vmatpush.msra.mxu0 0.0
        %v1928 = vand.u32 %v864, 4294901760
        %v1929 = vsub.f32 %v864, %v1928
        %v1930 = vand.u32 %v1929, 4294901760
        %1931 = vmatpush.msra.mxu0 %v1930
        %v1932 = vand.u32 %v1811, 4294901760
        %1933 = vmatmul.f32.gmra.mxu0 %v1932
        %v1934 = vpop.f32.mrf.mxu0
        %v1935 = vadd.f32 %v1911, %v1934
        %1936 = vdwg.mxu0
        %1937 = vmatpush.msra.mxu0 0.0
        %1938 = vmatpush.msra.mxu0 0.0
        %1939 = vmatpush.msra.mxu0 0.0
        %1940 = vmatpush.msra.mxu0 0.0
        %1941 = vmatpush.msra.mxu0 0.0
        %1942 = vmatpush.msra.mxu0 0.0
        %1943 = vmatpush.msra.mxu0 0.0
        %1944 = vmatpush.msra.mxu0 0.0
        %1945 = vmatpush.msra.mxu0 0.0
        %1946 = vmatpush.msra.mxu0 0.0
        %1947 = vmatpush.msra.mxu0 0.0
        %1948 = vmatpush.msra.mxu0 0.0
        %1949 = vmatpush.msra.mxu0 0.0
        %1950 = vmatpush.msra.mxu0 0.0
        %1951 = vmatpush.msra.mxu0 0.0
        %v1952 = vand.u32 %v864, 4294901760
        %1953 = vmatpush.msra.mxu0 %v1952
        %v1954 = vand.u32 %v1811, 4294901760
        %1955 = vmatmul.f32.gmra.mxu0 %v1954
        %v1956 = vpop.f32.mrf.mxu0
        %v1957 = vadd.f32 %v1935, %v1956
        %1958 = vdwg.mxu0
        %v1960 = vsel %vm867, %v1499, 0
        %1962 = vmatpush.msra.mxu0 0.0
        %1963 = vmatpush.msra.mxu0 0.0
        %1964 = vmatpush.msra.mxu0 0.0
        %1965 = vmatpush.msra.mxu0 0.0
        %1966 = vmatpush.msra.mxu0 0.0
        %1967 = vmatpush.msra.mxu0 0.0
        %1968 = vmatpush.msra.mxu0 0.0
        %1969 = vmatpush.msra.mxu0 0.0
        %1970 = vmatpush.msra.mxu0 0.0
        %1971 = vmatpush.msra.mxu0 0.0
        %1972 = vmatpush.msra.mxu0 0.0
        %1973 = vmatpush.msra.mxu0 0.0
        %1974 = vmatpush.msra.mxu0 0.0
        %1975 = vmatpush.msra.mxu0 0.0
        %1976 = vmatpush.msra.mxu0 0.0
        %v1977 = vand.u32 %v866, 4294901760
        %1978 = vmatpush.msra.mxu0 %v1977
        %v1979 = vand.u32 %v1960, 4294901760
        %v1980 = vsub.f32 %v1960, %v1979
        %v1981 = vand.u32 %v1980, 4294901760
        %v1982 = vsub.f32 %v1980, %v1981
        %v1983 = vand.u32 %v1982, 4294901760
        %1984 = vmatmul.f32.gmra.mxu0 %v1983
        %v1985 = vpop.f32.mrf.mxu0
        %v1986 = vadd.f32 0.0, %v1985
        %1987 = vdwg.mxu0
        %1988 = vmatpush.msra.mxu0 0.0
        %1989 = vmatpush.msra.mxu0 0.0
        %1990 = vmatpush.msra.mxu0 0.0
        %1991 = vmatpush.msra.mxu0 0.0
        %1992 = vmatpush.msra.mxu0 0.0
        %1993 = vmatpush.msra.mxu0 0.0
        %1994 = vmatpush.msra.mxu0 0.0
        %1995 = vmatpush.msra.mxu0 0.0
        %1996 = vmatpush.msra.mxu0 0.0
        %1997 = vmatpush.msra.mxu0 0.0
        %1998 = vmatpush.msra.mxu0 0.0
        %1999 = vmatpush.msra.mxu0 0.0
        %2000 = vmatpush.msra.mxu0 0.0
        %2001 = vmatpush.msra.mxu0 0.0
        %2002 = vmatpush.msra.mxu0 0.0
        %v2003 = vand.u32 %v866, 4294901760
        %v2004 = vsub.f32 %v866, %v2003
        %v2005 = vand.u32 %v2004, 4294901760
        %v2006 = vsub.f32 %v2004, %v2005
        %v2007 = vand.u32 %v2006, 4294901760
        %2008 = vmatpush.msra.mxu0 %v2007
        %v2009 = vand.u32 %v1960, 4294901760
        %2010 = vmatmul.f32.gmra.mxu0 %v2009
        %v2011 = vpop.f32.mrf.mxu0
        %v2012 = vadd.f32 %v1986, %v2011
        %2013 = vdwg.mxu0
        %2014 = vmatpush.msra.mxu0 0.0
        %2015 = vmatpush.msra.mxu0 0.0
        %2016 = vmatpush.msra.mxu0 0.0
        %2017 = vmatpush.msra.mxu0 0.0
        %2018 = vmatpush.msra.mxu0 0.0
        %2019 = vmatpush.msra.mxu0 0.0
        %2020 = vmatpush.msra.mxu0 0.0
        %2021 = vmatpush.msra.mxu0 0.0
        %2022 = vmatpush.msra.mxu0 0.0
        %2023 = vmatpush.msra.mxu0 0.0
        %2024 = vmatpush.msra.mxu0 0.0
        %2025 = vmatpush.msra.mxu0 0.0
        %2026 = vmatpush.msra.mxu0 0.0
        %2027 = vmatpush.msra.mxu0 0.0
        %2028 = vmatpush.msra.mxu0 0.0
        %v2029 = vand.u32 %v866, 4294901760
        %v2030 = vsub.f32 %v866, %v2029
        %2031 = vmatpush.msra.mxu0 %v2030
        %v2032 = vand.u32 %v1960, 4294901760
        %v2033 = vsub.f32 %v1960, %v2032
        %2034 = vmatmul.f32.gmra.mxu0 %v2033
        %v2035 = vpop.f32.mrf.mxu0
        %v2036 = vadd.f32 %v2012, %v2035
        %2037 = vdwg.mxu0
        %2038 = vmatpush.msra.mxu0 0.0
        %2039 = vmatpush.msra.mxu0 0.0
        %2040 = vmatpush.msra.mxu0 0.0
        %2041 = vmatpush.msra.mxu0 0.0
        %2042 = vmatpush.msra.mxu0 0.0
        %2043 = vmatpush.msra.mxu0 0.0
        %2044 = vmatpush.msra.mxu0 0.0
        %2045 = vmatpush.msra.mxu0 0.0
        %2046 = vmatpush.msra.mxu0 0.0
        %2047 = vmatpush.msra.mxu0 0.0
        %2048 = vmatpush.msra.mxu0 0.0
        %2049 = vmatpush.msra.mxu0 0.0
        %2050 = vmatpush.msra.mxu0 0.0
        %2051 = vmatpush.msra.mxu0 0.0
        %2052 = vmatpush.msra.mxu0 0.0
        %v2053 = vand.u32 %v866, 4294901760
        %2054 = vmatpush.msra.mxu0 %v2053
        %v2055 = vand.u32 %v1960, 4294901760
        %v2056 = vsub.f32 %v1960, %v2055
        %v2057 = vand.u32 %v2056, 4294901760
        %2058 = vmatmul.f32.gmra.mxu0 %v2057
        %v2059 = vpop.f32.mrf.mxu0
        %v2060 = vadd.f32 %v2036, %v2059
        %2061 = vdwg.mxu0
        %2062 = vmatpush.msra.mxu0 0.0
        %2063 = vmatpush.msra.mxu0 0.0
        %2064 = vmatpush.msra.mxu0 0.0
        %2065 = vmatpush.msra.mxu0 0.0
        %2066 = vmatpush.msra.mxu0 0.0
        %2067 = vmatpush.msra.mxu0 0.0
        %2068 = vmatpush.msra.mxu0 0.0
        %2069 = vmatpush.msra.mxu0 0.0
        %2070 = vmatpush.msra.mxu0 0.0
        %2071 = vmatpush.msra.mxu0 0.0
        %2072 = vmatpush.msra.mxu0 0.0
        %2073 = vmatpush.msra.mxu0 0.0
        %2074 = vmatpush.msra.mxu0 0.0
        %2075 = vmatpush.msra.mxu0 0.0
        %2076 = vmatpush.msra.mxu0 0.0
        %v2077 = vand.u32 %v866, 4294901760
        %v2078 = vsub.f32 %v866, %v2077
        %v2079 = vand.u32 %v2078, 4294901760
        %2080 = vmatpush.msra.mxu0 %v2079
        %v2081 = vand.u32 %v1960, 4294901760
        %2082 = vmatmul.f32.gmra.mxu0 %v2081
        %v2083 = vpop.f32.mrf.mxu0
        %v2084 = vadd.f32 %v2060, %v2083
        %2085 = vdwg.mxu0
        %2086 = vmatpush.msra.mxu0 0.0
        %2087 = vmatpush.msra.mxu0 0.0
        %2088 = vmatpush.msra.mxu0 0.0
        %2089 = vmatpush.msra.mxu0 0.0
        %2090 = vmatpush.msra.mxu0 0.0
        %2091 = vmatpush.msra.mxu0 0.0
        %2092 = vmatpush.msra.mxu0 0.0
        %2093 = vmatpush.msra.mxu0 0.0
        %2094 = vmatpush.msra.mxu0 0.0
        %2095 = vmatpush.msra.mxu0 0.0
        %2096 = vmatpush.msra.mxu0 0.0
        %2097 = vmatpush.msra.mxu0 0.0
        %2098 = vmatpush.msra.mxu0 0.0
        %2099 = vmatpush.msra.mxu0 0.0
        %2100 = vmatpush.msra.mxu0 0.0
        %v2101 = vand.u32 %v866, 4294901760
        %2102 = vmatpush.msra.mxu0 %v2101
        %v2103 = vand.u32 %v1960, 4294901760
        %2104 = vmatmul.f32.gmra.mxu0 %v2103
        %v2105 = vpop.f32.mrf.mxu0
        %v2106 = vadd.f32 %v2084, %v2105
        %2107 = vdwg.mxu0
        %v2108 = vrcp.pop %v1502
        %v2109 = vmul.f32 %v1502, %v2108
        %v2110 = vsub.f32 1.0, %v2109
        %v2111 = vmul.f32 %v2108, %v2110
        %v2112 = vadd.f32 %v2108, %v2111
        %vm2113 = vweird.f32 %v1502
        %vm2114 = vweird.f32 %v2108
        %vm2115 = vmor %vm2113, %vm2114
        %v2116 = vsel %vm2115, %v2108, %v2112
        %v2117 = vand.u32 2147483647, %v1502
        %vm2118 = vcmp.eq.f32.partialorder %v2117, 8.507059e+37
        %v2119 = vand.u32 %v1502, 2147483648
        %v2120 = vor.u32 1.1754944e-38, %v2119
        %v2121 = vsel %vm2118, %v2120, %v2116
        %v2122 = vmul.f32 %v1659, %v2121
        %v2123 = vrcp.pop %v1505
        %v2124 = vmul.f32 %v1505, %v2123
        %v2125 = vsub.f32 1.0, %v2124
        %v2126 = vmul.f32 %v2123, %v2125
        %v2127 = vadd.f32 %v2123, %v2126
        %vm2128 = vweird.f32 %v1505
        %vm2129 = vweird.f32 %v2123
        %vm2130 = vmor %vm2128, %vm2129
        %v2131 = vsel %vm2130, %v2123, %v2127
        %v2132 = vand.u32 2147483647, %v1505
        %vm2133 = vcmp.eq.f32.partialorder %v2132, 8.507059e+37
        %v2134 = vand.u32 %v1505, 2147483648
        %v2135 = vor.u32 1.1754944e-38, %v2134
        %v2136 = vsel %vm2133, %v2135, %v2131
        %v2137 = vmul.f32 %v1808, %v2136
        %v2138 = vrcp.pop %v1508
        %v2139 = vmul.f32 %v1508, %v2138
        %v2140 = vsub.f32 1.0, %v2139
        %v2141 = vmul.f32 %v2138, %v2140
        %v2142 = vadd.f32 %v2138, %v2141
        %vm2143 = vweird.f32 %v1508
        %vm2144 = vweird.f32 %v2138
        %vm2145 = vmor %vm2143, %vm2144
        %v2146 = vsel %vm2145, %v2138, %v2142
        %v2147 = vand.u32 2147483647, %v1508
        %vm2148 = vcmp.eq.f32.partialorder %v2147, 8.507059e+37
        %v2149 = vand.u32 %v1508, 2147483648
        %v2150 = vor.u32 1.1754944e-38, %v2149
        %v2151 = vsel %vm2148, %v2150, %v2146
        %v2152 = vmul.f32 %v1957, %v2151
        %v2153 = vrcp.pop %v1511
        %v2154 = vmul.f32 %v1511, %v2153
        %v2155 = vsub.f32 1.0, %v2154
        %v2156 = vmul.f32 %v2153, %v2155
        %v2157 = vadd.f32 %v2153, %v2156
        %vm2158 = vweird.f32 %v1511
        %vm2159 = vweird.f32 %v2153
        %vm2160 = vmor %vm2158, %vm2159
        %v2161 = vsel %vm2160, %v2153, %v2157
        %v2162 = vand.u32 2147483647, %v1511
        %vm2163 = vcmp.eq.f32.partialorder %v2162, 8.507059e+37
        %v2164 = vand.u32 %v1511, 2147483648
        %v2165 = vor.u32 1.1754944e-38, %v2164
        %v2166 = vsel %vm2163, %v2165, %v2161
        %v2167 = vmul.f32 %v2106, %v2166
        %v2168 = vrot.slane %v2152, 4
        %v2169 = vsel %vm513, %v2168, %v2122
        %v2170 = vrot.slane %v2122, 4
        %v2171 = vsel %vm513, %v2152, %v2170
        %v2173 = vunpack.c.l.s4 1983009808
        %v2174 = vunpack.c.0.s8 %v2173
        %v2175 = vperm.slane %v2169, %v2174
        %v2177 = vunpack.c.l.s4 1983009808
        %v2178 = vunpack.c.0.s8 %v2177
        %v2179 = vperm.slane %v2171, %v2178
        %v2180 = vrot.slane %v2167, 4
        %v2181 = vsel %vm513, %v2180, %v2137
        %v2182 = vrot.slane %v2137, 4
        %v2183 = vsel %vm513, %v2167, %v2182
        %v2185 = vunpack.c.l.s4 1983009808
        %v2186 = vunpack.c.0.s8 %v2185
        %v2187 = vperm.slane %v2181, %v2186
        %v2189 = vunpack.c.l.s4 1983009808
        %v2190 = vunpack.c.0.s8 %v2189
        %v2191 = vperm.slane %v2183, %v2190
        %v2192 = vrot.slane %v2187, 4
        %v2193 = vsel %vm513, %v2192, %v2175
        %v2194 = vrot.slane %v2175, 4
        %v2195 = vsel %vm513, %v2187, %v2194
        %v2197 = vunpack.c.l.s4 1934713408
        %v2198 = vunpack.c.0.s8 %v2197
        %v2199 = vperm.slane %v2193, %v2198
        %v2201 = vunpack.c.l.s4 1934713408
        %v2202 = vunpack.c.0.s8 %v2201
        %v2203 = vperm.slane %v2195, %v2202
        %v2204 = vrot.slane %v2191, 4
        %v2205 = vsel %vm513, %v2204, %v2179
        %v2206 = vrot.slane %v2179, 4
        %v2207 = vsel %vm513, %v2191, %v2206
        %v2209 = vunpack.c.l.s4 1934713408
        %v2210 = vunpack.c.0.s8 %v2209
        %v2211 = vperm.slane %v2205, %v2210
        %v2213 = vunpack.c.l.s4 1934713408
        %v2214 = vunpack.c.0.s8 %v2213
        %v2215 = vperm.slane %v2207, %v2214
        %v2216 = vrot.slane %v2199, 4
        %v2217 = vsel %vm513, 0.0, %v2216
        %v2218 = vrot.slane %v2203, 4
        %v2219 = vsel %vm513, 0.0, %v2218
        %v2220 = vrot.slane %v2211, 4
        %v2221 = vsel %vm513, 0.0, %v2220
        %v2222 = vrot.slane %v2215, 4
        %v2223 = vsel %vm513, 0.0, %v2222
        %v2224 = vsel %vm513, %v2218, %v2199
        %v2226 = vunpack.c.l.s4 1983009808
        %v2227 = vunpack.c.0.s8 %v2226
        %v2228 = vperm.slane %v2224, %v2227
        %v2229 = vrot.slane %v2219, 4
        %v2230 = vsel %vm513, %v2229, %v2217
        %v2232 = vunpack.c.l.s4 1983009808
        %v2233 = vunpack.c.0.s8 %v2232
        %v2234 = vperm.slane %v2230, %v2233
        %v2235 = vsel %vm513, %v2222, %v2211
        %v2237 = vunpack.c.l.s4 1983009808
        %v2238 = vunpack.c.0.s8 %v2237
        %v2239 = vperm.slane %v2235, %v2238
        %v2240 = vrot.slane %v2223, 4
        %v2241 = vsel %vm513, %v2240, %v2221
        %v2243 = vunpack.c.l.s4 1983009808
        %v2244 = vunpack.c.0.s8 %v2243
        %v2245 = vperm.slane %v2241, %v2244
        %v2246 = vrot.slane %v2234, 4
        %v2247 = vsel %vm513, %v2246, %v2228
        %v2248 = vrot.slane %v2228, 4
        %v2249 = vsel %vm513, %v2234, %v2248
        %v2251 = vunpack.c.l.s4 1934713408
        %v2252 = vunpack.c.0.s8 %v2251
        %v2253 = vperm.slane %v2247, %v2252
        %v2255 = vunpack.c.l.s4 1934713408
        %v2256 = vunpack.c.0.s8 %v2255
        %v2257 = vperm.slane %v2249, %v2256
        %v2258 = vrot.slane %v2245, 4
        %v2259 = vsel %vm513, %v2258, %v2239
        %v2260 = vrot.slane %v2239, 4
        %v2261 = vsel %vm513, %v2245, %v2260
        %v2263 = vunpack.c.l.s4 1934713408
        %v2264 = vunpack.c.0.s8 %v2263
        %v2265 = vperm.slane %v2259, %v2264
        %v2267 = vunpack.c.l.s4 1934713408
        %v2268 = vunpack.c.0.s8 %v2267
        %v2269 = vperm.slane %v2261, %v2268
        %v2270 = vrot.slane %v2265, 4
        %v2271 = vsel %vm513, %v2270, %v2253
        %v2272 = vrot.slane %v2253, 4
        %v2273 = vsel %vm513, %v2265, %v2272
        %v2274 = vrot.slane %v2269, 4
        %v2275 = vsel %vm513, %v2274, %v2257
        %v2276 = vrot.slane %v2257, 4
        %v2277 = vsel %vm513, %v2269, %v2276
        %2279 = vrot.lane.b32.xlu0 %v2273, 8
        %v2280 = vpop.permute.xlu0 %2279
        %2283 = vrot.lane.b32.xlu0 %v2275, 16
        %v2284 = vpop.permute.xlu0 %2283
        %2287 = vrot.lane.b32.xlu0 %v2277, 24
        %v2288 = vpop.permute.xlu0 %2287
        %v2290 = vsel %vm867, %v2271, %v2280
        %vm2291 = vcmask 130048
        %v2292 = vsel %vm2291, %v2290, %v2284
        %vm2293 = vcmask 195584
        %v2294 = vsel %vm2293, %v2292, %v2288
        %v2295 = vld [vmem:[#allocation7] sm:$0xff]
        %v2296 = vld [vmem:[#allocation7 + $0x8] sm:$0xff]
        %v2297 = vld [vmem:[#allocation7 + $0x10] sm:$0xff]
        %v2298 = vld [vmem:[#allocation7 + $0x18] sm:$0xff]
        %v2299 = vld [vmem:[%s4] sm:$0x1]
        %v2301 = vperm.slane %v2299, 0
        %v2304 = vsel %vm276, %v2294, 0
        %2306 = vmatpush.msra.mxu0 0.0
        %2307 = vmatpush.msra.mxu0 0.0
        %2308 = vmatpush.msra.mxu0 0.0
        %2309 = vmatpush.msra.mxu0 0.0
        %2310 = vmatpush.msra.mxu0 0.0
        %2311 = vmatpush.msra.mxu0 0.0
        %2312 = vmatpush.msra.mxu0 0.0
        %2313 = vmatpush.msra.mxu0 0.0
        %2314 = vmatpush.msra.mxu0 0.0
        %2315 = vmatpush.msra.mxu0 0.0
        %2316 = vmatpush.msra.mxu0 0.0
        %2317 = vmatpush.msra.mxu0 0.0
        %v2318 = vand.u32 %v2298, 4294901760
        %2319 = vmatpush.msra.mxu0 %v2318
        %v2320 = vand.u32 %v2297, 4294901760
        %2321 = vmatpush.msra.mxu0 %v2320
        %v2322 = vand.u32 %v2296, 4294901760
        %2323 = vmatpush.msra.mxu0 %v2322
        %v2324 = vand.u32 %v2295, 4294901760
        %2325 = vmatpush.msra.mxu0 %v2324
        %v2326 = vand.u32 %v2304, 4294901760
        %v2327 = vsub.f32 %v2304, %v2326
        %v2328 = vand.u32 %v2327, 4294901760
        %v2329 = vsub.f32 %v2327, %v2328
        %v2330 = vand.u32 %v2329, 4294901760
        %2331 = vmatmul.f32.gmra.mxu0 %v2330
        %v2332 = vpop.f32.mrf.mxu0
        %v2333 = vadd.f32 %v2301, %v2332
        %2334 = vdwg.mxu0
        %2335 = vmatpush.msra.mxu0 0.0
        %2336 = vmatpush.msra.mxu0 0.0
        %2337 = vmatpush.msra.mxu0 0.0
        %2338 = vmatpush.msra.mxu0 0.0
        %2339 = vmatpush.msra.mxu0 0.0
        %2340 = vmatpush.msra.mxu0 0.0
        %2341 = vmatpush.msra.mxu0 0.0
        %2342 = vmatpush.msra.mxu0 0.0
        %2343 = vmatpush.msra.mxu0 0.0
        %2344 = vmatpush.msra.mxu0 0.0
        %2345 = vmatpush.msra.mxu0 0.0
        %2346 = vmatpush.msra.mxu0 0.0
        %v2347 = vand.u32 %v2298, 4294901760
        %v2348 = vsub.f32 %v2298, %v2347
        %v2349 = vand.u32 %v2348, 4294901760
        %v2350 = vsub.f32 %v2348, %v2349
        %v2351 = vand.u32 %v2350, 4294901760
        %2352 = vmatpush.msra.mxu0 %v2351
        %v2353 = vand.u32 %v2297, 4294901760
        %v2354 = vsub.f32 %v2297, %v2353
        %v2355 = vand.u32 %v2354, 4294901760
        %v2356 = vsub.f32 %v2354, %v2355
        %v2357 = vand.u32 %v2356, 4294901760
        %2358 = vmatpush.msra.mxu0 %v2357
        %v2359 = vand.u32 %v2296, 4294901760
        %v2360 = vsub.f32 %v2296, %v2359
        %v2361 = vand.u32 %v2360, 4294901760
        %v2362 = vsub.f32 %v2360, %v2361
        %v2363 = vand.u32 %v2362, 4294901760
        %2364 = vmatpush.msra.mxu0 %v2363
        %v2365 = vand.u32 %v2295, 4294901760
        %v2366 = vsub.f32 %v2295, %v2365
        %v2367 = vand.u32 %v2366, 4294901760
        %v2368 = vsub.f32 %v2366, %v2367
        %v2369 = vand.u32 %v2368, 4294901760
        %2370 = vmatpush.msra.mxu0 %v2369
        %v2371 = vand.u32 %v2304, 4294901760
        %2372 = vmatmul.f32.gmra.mxu0 %v2371
        %v2373 = vpop.f32.mrf.mxu0
        %v2374 = vadd.f32 %v2333, %v2373
        %2375 = vdwg.mxu0
        %2376 = vmatpush.msra.mxu0 0.0
        %2377 = vmatpush.msra.mxu0 0.0
        %2378 = vmatpush.msra.mxu0 0.0
        %2379 = vmatpush.msra.mxu0 0.0
        %2380 = vmatpush.msra.mxu0 0.0
        %2381 = vmatpush.msra.mxu0 0.0
        %2382 = vmatpush.msra.mxu0 0.0
        %2383 = vmatpush.msra.mxu0 0.0
        %2384 = vmatpush.msra.mxu0 0.0
        %2385 = vmatpush.msra.mxu0 0.0
        %2386 = vmatpush.msra.mxu0 0.0
        %2387 = vmatpush.msra.mxu0 0.0
        %v2388 = vand.u32 %v2298, 4294901760
        %v2389 = vsub.f32 %v2298, %v2388
        %2390 = vmatpush.msra.mxu0 %v2389
        %v2391 = vand.u32 %v2297, 4294901760
        %v2392 = vsub.f32 %v2297, %v2391
        %2393 = vmatpush.msra.mxu0 %v2392
        %v2394 = vand.u32 %v2296, 4294901760
        %v2395 = vsub.f32 %v2296, %v2394
        %2396 = vmatpush.msra.mxu0 %v2395
        %v2397 = vand.u32 %v2295, 4294901760
        %v2398 = vsub.f32 %v2295, %v2397
        %2399 = vmatpush.msra.mxu0 %v2398
        %v2400 = vand.u32 %v2304, 4294901760
        %v2401 = vsub.f32 %v2304, %v2400
        %2402 = vmatmul.f32.gmra.mxu0 %v2401
        %v2403 = vpop.f32.mrf.mxu0
        %v2404 = vadd.f32 %v2374, %v2403
        %2405 = vdwg.mxu0
        %2406 = vmatpush.msra.mxu0 0.0
        %2407 = vmatpush.msra.mxu0 0.0
        %2408 = vmatpush.msra.mxu0 0.0
        %2409 = vmatpush.msra.mxu0 0.0
        %2410 = vmatpush.msra.mxu0 0.0
        %2411 = vmatpush.msra.mxu0 0.0
        %2412 = vmatpush.msra.mxu0 0.0
        %2413 = vmatpush.msra.mxu0 0.0
        %2414 = vmatpush.msra.mxu0 0.0
        %2415 = vmatpush.msra.mxu0 0.0
        %2416 = vmatpush.msra.mxu0 0.0
        %2417 = vmatpush.msra.mxu0 0.0
        %v2418 = vand.u32 %v2298, 4294901760
        %2419 = vmatpush.msra.mxu0 %v2418
        %v2420 = vand.u32 %v2297, 4294901760
        %2421 = vmatpush.msra.mxu0 %v2420
        %v2422 = vand.u32 %v2296, 4294901760
        %2423 = vmatpush.msra.mxu0 %v2422
        %v2424 = vand.u32 %v2295, 4294901760
        %2425 = vmatpush.msra.mxu0 %v2424
        %v2426 = vand.u32 %v2304, 4294901760
        %v2427 = vsub.f32 %v2304, %v2426
        %v2428 = vand.u32 %v2427, 4294901760
        %2429 = vmatmul.f32.gmra.mxu0 %v2428
        %v2430 = vpop.f32.mrf.mxu0
        %v2431 = vadd.f32 %v2404, %v2430
        %2432 = vdwg.mxu0
        %2433 = vmatpush.msra.mxu0 0.0
        %2434 = vmatpush.msra.mxu0 0.0
        %2435 = vmatpush.msra.mxu0 0.0
        %2436 = vmatpush.msra.mxu0 0.0
        %2437 = vmatpush.msra.mxu0 0.0
        %2438 = vmatpush.msra.mxu0 0.0
        %2439 = vmatpush.msra.mxu0 0.0
        %2440 = vmatpush.msra.mxu0 0.0
        %2441 = vmatpush.msra.mxu0 0.0
        %2442 = vmatpush.msra.mxu0 0.0
        %2443 = vmatpush.msra.mxu0 0.0
        %2444 = vmatpush.msra.mxu0 0.0
        %v2445 = vand.u32 %v2298, 4294901760
        %v2446 = vsub.f32 %v2298, %v2445
        %v2447 = vand.u32 %v2446, 4294901760
        %2448 = vmatpush.msra.mxu0 %v2447
        %v2449 = vand.u32 %v2297, 4294901760
        %v2450 = vsub.f32 %v2297, %v2449
        %v2451 = vand.u32 %v2450, 4294901760
        %2452 = vmatpush.msra.mxu0 %v2451
        %v2453 = vand.u32 %v2296, 4294901760
        %v2454 = vsub.f32 %v2296, %v2453
        %v2455 = vand.u32 %v2454, 4294901760
        %2456 = vmatpush.msra.mxu0 %v2455
        %v2457 = vand.u32 %v2295, 4294901760
        %v2458 = vsub.f32 %v2295, %v2457
        %v2459 = vand.u32 %v2458, 4294901760
        %2460 = vmatpush.msra.mxu0 %v2459
        %v2461 = vand.u32 %v2304, 4294901760
        %2462 = vmatmul.f32.gmra.mxu0 %v2461
        %v2463 = vpop.f32.mrf.mxu0
        %v2464 = vadd.f32 %v2431, %v2463
        %2465 = vdwg.mxu0
        %2466 = vmatpush.msra.mxu0 0.0
        %2467 = vmatpush.msra.mxu0 0.0
        %2468 = vmatpush.msra.mxu0 0.0
        %2469 = vmatpush.msra.mxu0 0.0
        %2470 = vmatpush.msra.mxu0 0.0
        %2471 = vmatpush.msra.mxu0 0.0
        %2472 = vmatpush.msra.mxu0 0.0
        %2473 = vmatpush.msra.mxu0 0.0
        %2474 = vmatpush.msra.mxu0 0.0
        %2475 = vmatpush.msra.mxu0 0.0
        %2476 = vmatpush.msra.mxu0 0.0
        %2477 = vmatpush.msra.mxu0 0.0
        %v2478 = vand.u32 %v2298, 4294901760
        %2479 = vmatpush.msra.mxu0 %v2478
        %v2480 = vand.u32 %v2297, 4294901760
        %2481 = vmatpush.msra.mxu0 %v2480
        %v2482 = vand.u32 %v2296, 4294901760
        %2483 = vmatpush.msra.mxu0 %v2482
        %v2484 = vand.u32 %v2295, 4294901760
        %2485 = vmatpush.msra.mxu0 %v2484
        %v2486 = vand.u32 %v2304, 4294901760
        %2487 = vmatmul.f32.gmra.mxu0 %v2486
        %v2488 = vpop.f32.mrf.mxu0
        %v2489 = vadd.f32 %v2464, %v2488
        %2490 = vdwg.mxu0
        %2491 = vst.msk [vmem:[%s274] sm:$0xff] %vm276, %v2489
        %s2492 = sand.u32 %s141, 1
        %s2493 = scalar_lea.sflag [#allocation4], %s2492
        %s2494 = sand.u32 %s141, 1
        %s2495 = smul.addr %s2494, 8
        %s2496 = scalar_lea.vmem [#allocation8], %s2495
        // Predicated region
        $region53: #{tpu_custom_call.1} parent=39 // pred_check
          %p2497 = pneg %p151
        $region54: #{tpu_custom_call.1} parent=39 // pred_check_branch
          %2499 = sbr.rel (%p2497) target = $region56
        $region55: #{tpu_custom_call.1} parent=39 // pred_region
          %2501 = vsyncadd %s2493, 0
          %s2502 = smul.addr %s23, 8
          %s2503 = scalar_lea.hbm %s5, %s2502
          %s2505 = sshll.u32 %s2496, 4
          %s2506 = int_to_ptr.vmem [resolvable:$true] %s2505
          %s2507 = sshll.u32 %s2503, 4
          %s2508 = int_to_ptr.hbm [resolvable:$true] %s2507
          %2510 = dma.vmem_to_hbm [thread:$0]  %s2506, 128, %s2508, %s2493
        $region56: #{tpu_custom_call.1} parent=39 // pred_fallthru
          _
      $region40: #{tpu_custom_call.1} parent=5 // pred_fallthru
        _
      %p2511 = scmp.le.s32.totalorder 2, %s18
      // Predicated region
      $region57: #{tpu_custom_call.1} parent=5 // pred_check
        %p2512 = pneg %p2511
      $region58: #{tpu_custom_call.1} parent=5 // pred_check_branch
        %2514 = sbr.rel (%p2512) target = $region60
      $region59: #{tpu_custom_call.1} parent=5 // pred_region
        %s2515 = ssub.s32 %s18, 2
        // Predicated region
        $region61: #{tpu_custom_call.1} parent=59 // pred_check
          %p2516 = pneg %p157
        $region62: #{tpu_custom_call.1} parent=59 // pred_check_branch
          %2518 = sbr.rel (%p2516) target = $region64
        $region63: #{tpu_custom_call.1} parent=59 // pred_region
          %s2519 = sand.u32 %s142, 1
          %s2520 = scalar_lea.sflag [#allocation4], %s2519
          %s2521 = sand.u32 %s142, 1
          %s2522 = smul.addr %s2521, 8
          %s2523 = scalar_lea.vmem [#allocation8], %s2522
          %2525 = dma.done %s2520, 128
        $region64: #{tpu_custom_call.1} parent=59 // pred_fallthru
          _
      $region60: #{tpu_custom_call.1} parent=5 // pred_fallthru
        _
    $region6: #{tpu_custom_call.1} parent=1 // loop_footer
      %s22 = sadd.s32 1, %s18
    $region7: #{tpu_custom_call.1} parent=1 // loop_footer_branch
      %17 = sbr.rel target = $region3
    $region8: #{tpu_custom_call.1} parent=1 // loop_exit
      _
    %2526 = vsyncpa [#allocation3], 1
    %s2527 = scalar_lea.sflag [#allocation3], 1
    %2528 = vsyncpa %s2527, 1
    %2529 = vsyncpa [#allocation6], 1
    %2530 = vsyncpa [#allocation4], 1
    %s2531 = scalar_lea.sflag [#allocation4], 1
    %2532 = vsyncpa %s2531, 1

</llo_original>
